<compile_context>
chip_gen: v7x
topology: tpu7x:2x2x1
jax: 0.10.0
libtpu: 0.0.40
codegen_flags: <defaults>
</compile_context>

<pallas_src>
import functools

import jax
import jax.numpy as jnp
from jax import lax
from jax.experimental import pallas as pl
from jax.experimental.pallas import tpu as pltpu

CHANNELS = 64        # real channel count of the module
C_PAD = 128          # lane-dense padded channel count (full vreg lane width)
BN_EPS = 1e-5        # torch BatchNorm1d default eps
NODE_BLK = 512       # node-chunk size for one-hot construction (multiple of 128)
MAX_EDGE_TILE = 2048


def _round_up(a: int, b: int) -> int:
    return ((a + b - 1) // b) * b


def _vmem_limit_bytes() -> int:
    """Per-generation scoped-VMEM limit (v7x has half the VMEM of v5e/v6e)."""
    kind = ""
    try:
        kind = jax.devices()[0].device_kind.lower()
    except Exception:
        pass
    phys = 64 * 1024 * 1024 if ("v7" in kind or "7x" in kind) else 128 * 1024 * 1024
    return min(phys - 16 * 1024 * 1024, 100 * 1024 * 1024)


def conv_kernel(src_ref, tgt_ref, x_hbm, gamma_ref, beta_ref, wt_ref, b_ref,
                o_ref, x_vmem, acc_ref, xg_ref, dma_sem, *, n_real, nblk):
    """Grid: (num_edge_tiles,) -- trailing 'arbitrary' reduction over edge tiles.

    src_ref : (TE, 1)   i32   edge sources for this tile (padded edges -> 0)
    tgt_ref : (1, TE)   i32   edge targets for this tile (padded edges -> -1)
    x_hbm   : (Np, 128) bf16  node features in HBM (ANY); lane 64 = 1.0 count column
    o_ref   : (N, 64)   f32   output (written once at the last grid step)
    x_vmem  : (Np, 128) bf16  VMEM copy of x (DMA'd once at k == 0)
    acc_ref : (Np, 128) f32   running scatter-add (feature sums + counts)
    xg_ref  : (TE, 128) f32   gathered x[sources] for this edge tile
    """
    k = pl.program_id(0)

    @pl.when(k == 0)
    def _init():
        cp = pltpu.make_async_copy(x_hbm, x_vmem, dma_sem)
        cp.start()
        acc_ref[...] = jnp.zeros_like(acc_ref)
        cp.wait()

    te = tgt_ref.shape[1]
    n_pad = acc_ref.shape[0]
    n_chunks = n_pad // nblk

    srcs = src_ref[...]                                 # (TE, 1) i32
    tgts = tgt_ref[...]                                 # (1, TE) i32

    # ---- Pass 1: fused gather xg[e, :] = x[sources[e], :] as a K-split one-hot
    # matmul over node chunks (bf16 one-hots / f32 accumulation on the MXU). ----
    xg_ref[...] = jnp.zeros_like(xg_ref)
    gather_iota = lax.broadcasted_iota(jnp.int32, (te, nblk), 1)   # nodes on lanes

    def gather_chunk(c, carry):
        off = pl.multiple_of(c * nblk, nblk)
        src_oh = (gather_iota == (srcs - off)).astype(jnp.bfloat16)        # (TE, nblk)
        xg_ref[...] += jnp.dot(src_oh, x_vmem[pl.ds(off, nblk), :],
                               preferred_element_type=jnp.float32)
        return carry

    lax.fori_loop(0, n_chunks, gather_chunk, 0)
    xg16 = xg_ref[...].astype(jnp.bfloat16)             # exact: rows are bf16 copies

    # ---- Pass 2: scatter-add into the per-node accumulator, chunk-wise.
    # Lane CHANNELS accumulates per-target edge counts via x's ones column;
    # padded edges (target == -1) never match any node id. ----
    scatter_iota = lax.broadcasted_iota(jnp.int32, (nblk, te), 0)  # nodes on sublanes

    def scatter_chunk(c, carry):
        off = pl.multiple_of(c * nblk, nblk)
        tgt_oh = (scatter_iota == (tgts - off)).astype(jnp.bfloat16)       # (nblk, TE)
        acc_ref[pl.ds(off, nblk), :] += jnp.dot(tgt_oh, xg16,
                                                preferred_element_type=jnp.float32)
        return carry

    lax.fori_loop(0, n_chunks, scatter_chunk, 0)

    @pl.when(k == pl.num_programs(0) - 1)
    def _finalize():
        acc = acc_ref[...]                               # (Np, 128) f32
        counts = acc[:, CHANNELS:CHANNELS + 1]           # (Np, 1) in-degree
        mean_x = acc / jnp.maximum(counts, 1.0)          # scatter_mean (0 for isolated)

        # Mask padded node rows out of the batch statistics.
        row_ids = lax.broadcasted_iota(jnp.int32, (n_pad, 1), 0)
        valid = (row_ids < n_real).astype(jnp.float32)
        mean_x = mean_x * valid

        # BatchNorm1d (training mode): biased batch variance over the real rows.
        inv_n = 1.0 / n_real
        mu = jnp.sum(mean_x, axis=0, keepdims=True) * inv_n
        diff = (mean_x - mu) * valid
        var = jnp.sum(diff * diff, axis=0, keepdims=True) * inv_n
        xhat = (mean_x - mu) * lax.rsqrt(var + BN_EPS)
        y = xhat * gamma_ref[...] + beta_ref[...]

        # Linear (y @ W.T + b) on the zero-padded (128, 128) weight, then ReLU.
        out = jnp.dot(y, wt_ref[...], preferred_element_type=jnp.float32) + b_ref[...]
        o_ref[...] = jnp.maximum(out[:o_ref.shape[0], :o_ref.shape[1]], 0.0)


@functools.partial(jax.jit, static_argnames=("edge_tile",))
def conv_forward(x, sources, targets, gamma, beta, weight, bias, *, edge_tile=None):
    """x: f32[N, 64]; sources/targets: i32[E]; weight: f32[64, 64] (torch Linear layout)."""
    N, C = x.shape
    assert C == CHANNELS
    E = sources.shape[0]

    # Node chunking: nblk is a multiple of 128 (lane-dense gather one-hots); the node
    # axis is padded to a whole number of chunks (padded rows are masked out of BN).
    nblk = min(NODE_BLK, _round_up(N, 128))
    n_pad = _round_up(N, nblk)

    # Edge tile: VMEM-budget-driven, multiple of 128 (edge-block tiling requirement).
    vmem_limit = _vmem_limit_bytes()
    fixed = (n_pad * C_PAD * 2           # x_vmem scratch (bf16, single-buffered)
             + n_pad * C_PAD * 4         # acc scratch (f32)
             + 2 * N * C * 4             # output block (double-buffered)
             + 2 * C_PAD * C_PAD * 4     # W.T block (double-buffered)
             + 6 * C_PAD * 4             # gamma / beta / bias blocks
             + 4 * n_pad * C_PAD * 4)    # finalize temporaries (mean_x/xhat/y/out)
    per_edge_row = 10 * nblk + 1024      # one-hot + iota/compare transients + xg row
    te = (vmem_limit - fixed) // per_edge_row
    te = max(128, min(te, MAX_EDGE_TILE))
    if edge_tile is not None:
        te = max(128, min(te, int(edge_tile)))
    te = (te // 128) * 128
    te = min(te, _round_up(E, 128))
    e_pad = _round_up(E, te)
    num_tiles = e_pad // te

    # Pad edges; padded targets = -1 never match a node id -> contribute nothing.
    src_pad = jnp.zeros((e_pad, 1), jnp.int32).at[:E, 0].set(sources.astype(jnp.int32))
    tgt_pad = jnp.full((1, e_pad), -1, jnp.int32).at[0, :E].set(targets.astype(jnp.int32))

    # Lane-dense node features: lanes [:64] = x, lane 64 = 1.0 (count column), rest 0.
    x_pad = (jnp.zeros((n_pad, C_PAD), jnp.float32)
             .at[:N, :C].set(x).at[:N, C].set(1.0)).astype(jnp.bfloat16)

    gamma_pad = jnp.zeros((1, C_PAD), jnp.float32).at[0, :C].set(gamma)
    beta_pad = jnp.zeros((1, C_PAD), jnp.float32).at[0, :C].set(beta)
    wt_pad = jnp.zeros((C_PAD, C_PAD), jnp.float32).at[:C, :C].set(weight.T)
    b_pad = jnp.zeros((1, C_PAD), jnp.float32).at[0, :C].set(bias)

    kernel = functools.partial(conv_kernel, n_real=N, nblk=nblk)
    return pl.pallas_call(
        kernel,
        out_shape=jax.ShapeDtypeStruct((N, C), jnp.float32),
        grid=(num_tiles,),
        in_specs=[
            pl.BlockSpec((te, 1), lambda k: (k, 0)),          # sources, edge-tiled
            pl.BlockSpec((1, te), lambda k: (0, k)),          # targets, edge-tiled
            pl.BlockSpec(memory_space=pl.ANY),                # x: stays in HBM, DMA'd once
            pl.BlockSpec((1, C_PAD), lambda k: (0, 0)),       # gamma
            pl.BlockSpec((1, C_PAD), lambda k: (0, 0)),       # beta
            pl.BlockSpec((C_PAD, C_PAD), lambda k: (0, 0)),   # W.T (zero-padded)
            pl.BlockSpec((1, C_PAD), lambda k: (0, 0)),       # bias
        ],
        out_specs=pl.BlockSpec((N, C), lambda k: (0, 0)),     # full-array block, no slab
        scratch_shapes=[
            pltpu.VMEM((n_pad, C_PAD), jnp.bfloat16),   # resident node features
            pltpu.VMEM((n_pad, C_PAD), jnp.float32),    # scatter-add accumulator
            pltpu.VMEM((te, C_PAD), jnp.float32),       # gathered x[sources] per tile
            pltpu.SemaphoreType.DMA,                    # x HBM -> VMEM copy
        ],
        compiler_params=pltpu.CompilerParams(
            dimension_semantics=("arbitrary",),          # edge axis is a reduction
            vmem_limit_bytes=vmem_limit,
        ),
    )(src_pad, tgt_pad, x_pad, gamma_pad, beta_pad, wt_pad, b_pad)


def _reference(x, sources, targets, gamma, beta, weight, bias):
    """Pure-JAX reference (x cast to bf16 to mirror the kernel's MXU gather input)."""
    xb = x.astype(jnp.bfloat16).astype(jnp.float32)
    N, C = x.shape
    summed = jnp.zeros((N, C), jnp.float32).at[targets].add(xb[sources])
    counts = jnp.zeros((N, 1), jnp.float32).at[targets].add(1.0)
    mean_x = summed / jnp.maximum(counts, 1.0)
    mu = jnp.mean(mean_x, axis=0, keepdims=True)
    var = jnp.mean((mean_x - mu) ** 2, axis=0, keepdims=True)
    y = (mean_x - mu) * jax.lax.rsqrt(var + BN_EPS) * gamma + beta
    return jnp.maximum(y @ weight.T + bias, 0.0)


if __name__ == "__main__":
    key = jax.random.PRNGKey(0)
    kx, ks, kt, kw, kb, k2 = jax.random.split(key, 6)

    C = CHANNELS
    # Linear(C, C): weight xavier_normal_, bias ~ U(-1/sqrt(C), 1/sqrt(C));
    # BatchNorm1d(C): gamma = 1, beta = 0 at init.
    xavier_std = (2.0 / (C + C)) ** 0.5
    weight = xavier_std * jax.random.normal(kw, (C, C), dtype=jnp.float32)
    bias = jax.random.uniform(kb, (C,), minval=-1.0 / (C ** 0.5),
                              maxval=1.0 / (C ** 0.5), dtype=jnp.float32)
    gamma = jnp.ones((C,), dtype=jnp.float32)
    beta = jnp.zeros((C,), dtype=jnp.float32)

    # Small smoke test (single edge tile, single node chunk).
    N1, E1 = 16, 32
    x1 = jax.random.normal(kx, (N1, C), dtype=jnp.float32)
    s1 = jax.random.randint(ks, (E1,), 0, N1, dtype=jnp.int32)
    t1 = jax.random.randint(kt, (E1,), 0, N1, dtype=jnp.int32)
    out1 = conv_forward(x1, s1, t1, gamma, beta, weight, bias)
    jax.block_until_ready(out1)
    assert out1.shape == (N1, C) and out1.dtype == jnp.float32
    ref1 = _reference(x1, s1, t1, gamma, beta, weight, bias)
    assert bool(jnp.allclose(out1, ref1, atol=2e-2, rtol=2e-2)), "mismatch (small)"

    # Larger test: multiple edge tiles and multiple node chunks.
    N2, E2 = 700, 4096
    kx2, ks2, kt2 = jax.random.split(k2, 3)
    x2 = jax.random.normal(kx2, (N2, C), dtype=jnp.float32)
    s2 = jax.random.randint(ks2, (E2,), 0, N2, dtype=jnp.int32)
    t2 = jax.random.randint(kt2, (E2,), 0, N2, dtype=jnp.int32)
    out2 = conv_forward(x2, s2, t2, gamma, beta, weight, bias, edge_tile=512)
    jax.block_until_ready(out2)
    ref2 = _reference(x2, s2, t2, gamma, beta, weight, bias)
    assert bool(jnp.allclose(out2, ref2, atol=2e-2, rtol=2e-2)), "mismatch (large)"

    print("KERNEL_OK")
</pallas_src>

<mosaic_0001>
module attributes {stable_mosaic.version = 11 : i64} {
  func.func @conv_kernel(%arg0: i32, %arg1: memref<128x1xi32, #tpu.memory_space<vmem>>, %arg2: memref<1x128xi32, #tpu.memory_space<vmem>>, %arg3: memref<128x128xbf16, #tpu.memory_space<any>>, %arg4: memref<1x128xf32, #tpu.memory_space<vmem>>, %arg5: memref<1x128xf32, #tpu.memory_space<vmem>>, %arg6: memref<128x128xf32, #tpu.memory_space<vmem>>, %arg7: memref<1x128xf32, #tpu.memory_space<vmem>>, %arg8: memref<16x64xf32, #tpu.memory_space<vmem>>, %arg9: memref<128x128xbf16, #tpu.memory_space<vmem>>, %arg10: memref<128x128xf32, #tpu.memory_space<vmem>>, %arg11: memref<128x128xf32, #tpu.memory_space<vmem>>, %arg12: memref<!tpu.dma_semaphore, #tpu.memory_space<semaphore_mem>>) attributes {dimension_semantics = [#tpu.dimension_semantics<arbitrary>], iteration_bounds = array<i64: 1>, scalar_prefetch = 0 : i64, scratch_operands = 4 : i64, tpu.core_type = #tpu.core_type<tc>, window_params = [{transform_indices = @transform_0, window_bounds = array<i64: 128, 1>}, {transform_indices = @transform_1, window_bounds = array<i64: 1, 128>}, {}, {pipeline_mode = #tpu.pipeline_mode<synchronous>, transform_indices = @transform_3, window_bounds = array<i64: 1, 128>}, {pipeline_mode = #tpu.pipeline_mode<synchronous>, transform_indices = @transform_4, window_bounds = array<i64: 1, 128>}, {pipeline_mode = #tpu.pipeline_mode<synchronous>, transform_indices = @transform_5, window_bounds = array<i64: 128, 128>}, {pipeline_mode = #tpu.pipeline_mode<synchronous>, transform_indices = @transform_6, window_bounds = array<i64: 1, 128>}, {pipeline_mode = #tpu.pipeline_mode<synchronous>, transform_indices = @transform_7, window_bounds = array<i64: 16, 64>}]} {
    %c0_i32 = arith.constant 0 : i32
    %0 = arith.cmpi eq, %arg0, %c0_i32 : i32
    %1 = arith.extui %0 : i1 to i32
    %c0_i32_0 = arith.constant 0 : i32
    %2 = arith.cmpi ne, %1, %c0_i32_0 : i32
    scf.if %2 {
      tpu.enqueue_dma source(%arg3 : memref<128x128xbf16, #tpu.memory_space<any>>) target(%arg9 : memref<128x128xbf16, #tpu.memory_space<vmem>>) target_semaphore(%arg12 : memref<!tpu.dma_semaphore, #tpu.memory_space<semaphore_mem>>)
      %cst_23 = arith.constant 0.000000e+00 : f32
      %44 = vector.broadcast %cst_23 : f32 to vector<128x128xf32>
      %c0_24 = arith.constant 0 : index
      %c0_25 = arith.constant 0 : index
      %45 = vector.load %arg10[%c0_24, %c0_25] : memref<128x128xf32, #tpu.memory_space<vmem>>, vector<128x128xf32>
      tpu.vector_store %arg10[%c0_24, %c0_25], %44 {strides = array<i32>} : memref<128x128xf32, #tpu.memory_space<vmem>>, vector<128x128xf32>,
      tpu.wait_dma2 semaphore(%arg12 : memref<!tpu.dma_semaphore, #tpu.memory_space<semaphore_mem>>) src(%arg3 : memref<128x128xbf16, #tpu.memory_space<any>>) dst(%arg9 : memref<128x128xbf16, #tpu.memory_space<vmem>>)
    } else {
    }
    %c0 = arith.constant 0 : index
    %c0_1 = arith.constant 0 : index
    %3 = vector.load %arg1[%c0, %c0_1] : memref<128x1xi32, #tpu.memory_space<vmem>>, vector<128x1xi32>
    %c0_2 = arith.constant 0 : index
    %c0_3 = arith.constant 0 : index
    %4 = vector.load %arg2[%c0_2, %c0_3] : memref<1x128xi32, #tpu.memory_space<vmem>>, vector<1x128xi32>
    %cst = arith.constant 0.000000e+00 : f32
    %5 = vector.broadcast %cst : f32 to vector<128x128xf32>
    %c0_4 = arith.constant 0 : index
    %c0_5 = arith.constant 0 : index
    %6 = vector.load %arg11[%c0_4, %c0_5] : memref<128x128xf32, #tpu.memory_space<vmem>>, vector<128x128xf32>
    tpu.vector_store %arg11[%c0_4, %c0_5], %5 {strides = array<i32>} : memref<128x128xf32, #tpu.memory_space<vmem>>, vector<128x128xf32>,
    %7 = tpu.iota {dimensions = array<i32: 1>} : vector<128x128xi32>
    %c0_i32_6 = arith.constant 0 : i32
    %c128_i32 = arith.constant 128 : i32
    %8 = arith.muli %c0_i32_6, %c128_i32 : i32
    %9 = tpu.assume_multiple %8, 128 : i32
    %10 = vector.broadcast %9 : i32 to vector<128x1xi32>
    %11 = arith.subi %3, %10 : vector<128x1xi32>
    %12 = vector.broadcast %11 : vector<128x1xi32> to vector<128x128xi32>
    %13 = arith.cmpi eq, %7, %12 : vector<128x128xi32>
    %14 = arith.extui %13 : vector<128x128xi1> to vector<128x128xi32>
    %15 = arith.sitofp %14 : vector<128x128xi32> to vector<128x128xf32>
    %16 = arith.truncf %15 : vector<128x128xf32> to vector<128x128xbf16>
    %c0_7 = arith.constant 0 : index
    %c0_8 = arith.constant 0 : index
    %17 = vector.load %arg11[%c0_7, %c0_8] : memref<128x128xf32, #tpu.memory_space<vmem>>, vector<128x128xf32>
    %18 = arith.index_cast %9 : i32 to index
    %c0_9 = arith.constant 0 : index
    %19 = vector.load %arg9[%18, %c0_9] : memref<128x128xbf16, #tpu.memory_space<vmem>>, vector<128x128xbf16>
    %cst_10 = arith.constant dense<0.000000e+00> : vector<128x128xf32>
    %20 = tpu.matmul %16, %19, %cst_10 {dimension_numbers = #tpu.dot_dimension_numbers<[1], [0], [0], [1], [0, 0, 1, 1], [], []>} : vector<128x128xbf16>, vector<128x128xbf16>, vector<128x128xf32> -> vector<128x128xf32>
    %21 = arith.addf %17, %20 : vector<128x128xf32>
    %c0_11 = arith.constant 0 : index
    %c0_12 = arith.constant 0 : index
    %22 = vector.load %arg11[%c0_11, %c0_12] : memref<128x128xf32, #tpu.memory_space<vmem>>, vector<128x128xf32>
    tpu.vector_store %arg11[%c0_11, %c0_12], %21 {strides = array<i32>} : memref<128x128xf32, #tpu.memory_space<vmem>>, vector<128x128xf32>,
    %c1_i32 = arith.constant 1 : i32
    %c0_13 = arith.constant 0 : index
    %c0_14 = arith.constant 0 : index
    %23 = vector.load %arg11[%c0_13, %c0_14] : memref<128x128xf32, #tpu.memory_space<vmem>>, vector<128x128xf32>
    %24 = arith.truncf %23 : vector<128x128xf32> to vector<128x128xbf16>
    %25 = tpu.iota {dimensions = array<i32: 0>} : vector<128x128xi32>
    %c0_i32_15 = arith.constant 0 : i32
    %c128_i32_16 = arith.constant 128 : i32
    %26 = arith.muli %c0_i32_15, %c128_i32_16 : i32
    %27 = tpu.assume_multiple %26, 128 : i32
    %28 = vector.broadcast %27 : i32 to vector<1x128xi32>
    %29 = arith.subi %4, %28 : vector<1x128xi32>
    %30 = vector.broadcast %29 : vector<1x128xi32> to vector<128x128xi32>
    %31 = arith.cmpi eq, %25, %30 : vector<128x128xi32>
    %32 = arith.extui %31 : vector<128x128xi1> to vector<128x128xi32>
    %33 = arith.sitofp %32 : vector<128x128xi32> to vector<128x128xf32>
    %34 = arith.truncf %33 : vector<128x128xf32> to vector<128x128xbf16>
    %35 = arith.index_cast %27 : i32 to index
    %c0_17 = arith.constant 0 : index
    %36 = vector.load %arg10[%35, %c0_17] : memref<128x128xf32, #tpu.memory_space<vmem>>, vector<128x128xf32>
    %cst_18 = arith.constant dense<0.000000e+00> : vector<128x128xf32>
    %37 = tpu.matmul %34, %24, %cst_18 {dimension_numbers = #tpu.dot_dimension_numbers<[1], [0], [0], [1], [0, 0, 1, 1], [], []>} : vector<128x128xbf16>, vector<128x128xbf16>, vector<128x128xf32> -> vector<128x128xf32>
    %38 = arith.addf %36, %37 : vector<128x128xf32>
    %39 = arith.index_cast %27 : i32 to index
    %c0_19 = arith.constant 0 : index
    %40 = vector.load %arg10[%39, %c0_19] : memref<128x128xf32, #tpu.memory_space<vmem>>, vector<128x128xf32>
    tpu.vector_store %arg10[%39, %c0_19], %38 {strides = array<i32>} : memref<128x128xf32, #tpu.memory_space<vmem>>, vector<128x128xf32>,
    %c1_i32_20 = arith.constant 1 : i32
    %c0_i32_21 = arith.constant 0 : i32
    %41 = arith.cmpi eq, %arg0, %c0_i32_21 : i32
    %42 = arith.extui %41 : i1 to i32
    %c0_i32_22 = arith.constant 0 : i32
    %43 = arith.cmpi ne, %42, %c0_i32_22 : i32
    scf.if %43 {
      %c0_23 = arith.constant 0 : index
      %c0_24 = arith.constant 0 : index
      %44 = vector.load %arg10[%c0_23, %c0_24] : memref<128x128xf32, #tpu.memory_space<vmem>>, vector<128x128xf32>
      %45 = vector.extract_strided_slice %44 {offsets = [0, 64], sizes = [128, 1], strides = [1, 1]} : vector<128x128xf32> to vector<128x1xf32>
      %cst_25 = arith.constant 1.000000e+00 : f32
      %46 = vector.broadcast %cst_25 : f32 to vector<128x1xf32>
      %47 = arith.maximumf %45, %46 : vector<128x1xf32>
      %48 = vector.broadcast %47 : vector<128x1xf32> to vector<128x128xf32>
      %49 = arith.divf %44, %48 : vector<128x128xf32>
      %50 = tpu.iota {dimensions = array<i32: 0>} : vector<128x1xi32>
      %c16_i32 = arith.constant 16 : i32
      %51 = vector.broadcast %c16_i32 : i32 to vector<128x1xi32>
      %52 = arith.cmpi slt, %50, %51 : vector<128x1xi32>
      %53 = arith.extui %52 : vector<128x1xi1> to vector<128x1xi32>
      %54 = arith.sitofp %53 : vector<128x1xi32> to vector<128x1xf32>
      %55 = vector.broadcast %54 : vector<128x1xf32> to vector<128x128xf32>
      %56 = arith.mulf %49, %55 : vector<128x128xf32>
      %cst_26 = arith.constant dense<0.000000e+00> : vector<128xf32>
      %57 = vector.multi_reduction <add>, %56, %cst_26 [0] : vector<128x128xf32> to vector<128xf32>
      %58 = vector.shape_cast %57 : vector<128xf32> to vector<1x128xf32>
      %cst_27 = arith.constant 6.250000e-02 : f32
      %59 = vector.broadcast %cst_27 : f32 to vector<1x128xf32>
      %60 = arith.mulf %58, %59 : vector<1x128xf32>
      %61 = vector.broadcast %60 : vector<1x128xf32> to vector<128x128xf32>
      %62 = arith.subf %56, %61 : vector<128x128xf32>
      %63 = vector.broadcast %54 : vector<128x1xf32> to vector<128x128xf32>
      %64 = arith.mulf %62, %63 : vector<128x128xf32>
      %65 = arith.mulf %64, %64 : vector<128x128xf32>
      %cst_28 = arith.constant dense<0.000000e+00> : vector<128xf32>
      %66 = vector.multi_reduction <add>, %65, %cst_28 [0] : vector<128x128xf32> to vector<128xf32>
      %67 = vector.shape_cast %66 : vector<128xf32> to vector<1x128xf32>
      %cst_29 = arith.constant 6.250000e-02 : f32
      %68 = vector.broadcast %cst_29 : f32 to vector<1x128xf32>
      %69 = arith.mulf %67, %68 : vector<1x128xf32>
      %70 = vector.broadcast %60 : vector<1x128xf32> to vector<128x128xf32>
      %71 = arith.subf %56, %70 : vector<128x128xf32>
      %cst_30 = arith.constant 9.99999974E-6 : f32
      %72 = vector.broadcast %cst_30 : f32 to vector<1x128xf32>
      %73 = arith.addf %69, %72 : vector<1x128xf32>
      %74 = math.rsqrt %73 : vector<1x128xf32>
      %75 = vector.broadcast %74 : vector<1x128xf32> to vector<128x128xf32>
      %76 = arith.mulf %71, %75 : vector<128x128xf32>
      %c0_31 = arith.constant 0 : index
      %c0_32 = arith.constant 0 : index
      %77 = vector.load %arg4[%c0_31, %c0_32] : memref<1x128xf32, #tpu.memory_space<vmem>>, vector<1x128xf32>
      %78 = vector.broadcast %77 : vector<1x128xf32> to vector<128x128xf32>
      %79 = arith.mulf %76, %78 : vector<128x128xf32>
      %c0_33 = arith.constant 0 : index
      %c0_34 = arith.constant 0 : index
      %80 = vector.load %arg5[%c0_33, %c0_34] : memref<1x128xf32, #tpu.memory_space<vmem>>, vector<1x128xf32>
      %81 = vector.broadcast %80 : vector<1x128xf32> to vector<128x128xf32>
      %82 = arith.addf %79, %81 : vector<128x128xf32>
      %c0_35 = arith.constant 0 : index
      %c0_36 = arith.constant 0 : index
      %83 = vector.load %arg6[%c0_35, %c0_36] : memref<128x128xf32, #tpu.memory_space<vmem>>, vector<128x128xf32>
      %cst_37 = arith.constant dense<0.000000e+00> : vector<128x128xf32>
      %84 = tpu.matmul %82, %83, %cst_37 {dimension_numbers = #tpu.dot_dimension_numbers<[1], [0], [0], [1], [0, 0, 1, 1], [], []>} : vector<128x128xf32>, vector<128x128xf32>, vector<128x128xf32> -> vector<128x128xf32>
      %c0_38 = arith.constant 0 : index
      %c0_39 = arith.constant 0 : index
      %85 = vector.load %arg7[%c0_38, %c0_39] : memref<1x128xf32, #tpu.memory_space<vmem>>, vector<1x128xf32>
      %86 = vector.broadcast %85 : vector<1x128xf32> to vector<128x128xf32>
      %87 = arith.addf %84, %86 : vector<128x128xf32>
      %88 = vector.extract_strided_slice %87 {offsets = [0, 0], sizes = [16, 64], strides = [1, 1]} : vector<128x128xf32> to vector<16x64xf32>
      %cst_40 = arith.constant 0.000000e+00 : f32
      %89 = vector.broadcast %cst_40 : f32 to vector<16x64xf32>
      %90 = arith.maximumf %88, %89 : vector<16x64xf32>
      %c0_41 = arith.constant 0 : index
      %c0_42 = arith.constant 0 : index
      %91 = vector.load %arg8[%c0_41, %c0_42] : memref<16x64xf32, #tpu.memory_space<vmem>>, vector<16x64xf32>
      tpu.vector_store %arg8[%c0_41, %c0_42], %90 {strides = array<i32>} : memref<16x64xf32, #tpu.memory_space<vmem>>, vector<16x64xf32>,
    } else {
    }
    return
  }
  func.func @transform_0(%arg0: i32) -> (i32, i32) {
    %c0_i32 = arith.constant 0 : i32
    %c0_i32_0 = arith.constant 0 : i32
    return %arg0, %c0_i32 : i32, i32
  }
  func.func @transform_1(%arg0: i32) -> (i32, i32) {
    %c0_i32 = arith.constant 0 : i32
    %c0_i32_0 = arith.constant 0 : i32
    return %c0_i32, %arg0 : i32, i32
  }
  func.func @transform_3(%arg0: i32) -> (i32, i32) {
    %c0_i32 = arith.constant 0 : i32
    %c0_i32_0 = arith.constant 0 : i32
    %c0_i32_1 = arith.constant 0 : i32
    return %c0_i32, %c0_i32_0 : i32, i32
  }
  func.func @transform_4(%arg0: i32) -> (i32, i32) {
    %c0_i32 = arith.constant 0 : i32
    %c0_i32_0 = arith.constant 0 : i32
    %c0_i32_1 = arith.constant 0 : i32
    return %c0_i32, %c0_i32_0 : i32, i32
  }
  func.func @transform_5(%arg0: i32) -> (i32, i32) {
    %c0_i32 = arith.constant 0 : i32
    %c0_i32_0 = arith.constant 0 : i32
    %c0_i32_1 = arith.constant 0 : i32
    return %c0_i32, %c0_i32_0 : i32, i32
  }
  func.func @transform_6(%arg0: i32) -> (i32, i32) {
    %c0_i32 = arith.constant 0 : i32
    %c0_i32_0 = arith.constant 0 : i32
    %c0_i32_1 = arith.constant 0 : i32
    return %c0_i32, %c0_i32_0 : i32, i32
  }
  func.func @transform_7(%arg0: i32) -> (i32, i32) {
    %c0_i32 = arith.constant 0 : i32
    %c0_i32_0 = arith.constant 0 : i32
    %c0_i32_1 = arith.constant 0 : i32
    return %c0_i32, %c0_i32_0 : i32, i32
  }
}

</mosaic_0001>

<llo_original>
// kernel: conv_forward.1
$region0: #{conv_forward.1}
  #allocation0 [shape = 'u32[]', space=smem, size = 0x4, offset = 0x4, fixed_abs, tag = 'smem constant byte address 0x4 - core index']
  #allocation1 [shape = 'u32[144,128]{1,0:T(1,128)}', space=vmem, size = 0x12000, scoped, tag = 'internal scratch']
  #allocation2 [shape = 'bf16[128,128]{1,0:T(16,128)(2,1)}', space=vmem, size = 0x8000, scoped, tag = 'scratch operand']
  #allocation3 [shape = 'f32[128,128]{1,0:T(8,128)}', space=vmem, size = 0x10000, scoped, tag = 'scratch operand']
  #allocation4 [shape = 'f32[128,128]{1,0:T(8,128)}', space=vmem, size = 0x10000, scoped, tag = 'scratch operand']
  #allocation5 [shape = 's32[1]{0}', space=sflag, size = 0x4, scoped, tag = 'scratch operand']
  #allocation18 [shape = 's32[]', space=sflag, size = 0x4, offset = 0, fixed_abs, tag = 'sflag constant byte address 0x0 - dummy sync flag']
  #allocation19 [shape = 's32[]', space=sflag, size = 0x4, offset = 0, fixed_abs, tag = 'sflag constant byte address 0x0 - dummy sync flag']
  #allocation20 [shape = 'u32[]', space=smem, size = 0x4, offset = 0x44, fixed_abs, tag = 'smem constant byte address 0x44 - assertion arg 0']
  #allocation21 [shape = 'u32[]', space=smem, size = 0x4, offset = 0x48, fixed_abs, tag = 'smem constant byte address 0x48 - assertion arg 1']
  %s0 = inlined_call_operand.hbm [shape: s32[128,1], index: 0, kind: input, shape index: {}]
  %s1 = inlined_call_operand.hbm [shape: s32[1,128], index: 1, kind: input, shape index: {}]
  %s2 = inlined_call_operand.hbm [shape: bf16[128,128], index: 2, kind: input, shape index: {}]
  %s3 = inlined_call_operand.hbm [shape: f32[1,128], index: 3, kind: input, shape index: {}]
  %s4 = inlined_call_operand.hbm [shape: f32[1,128], index: 4, kind: input, shape index: {}]
  %s5 = inlined_call_operand.hbm [shape: f32[128,128], index: 5, kind: input, shape index: {}]
  %s6 = inlined_call_operand.hbm [shape: f32[1,128], index: 6, kind: input, shape index: {}]
  %s7 = inlined_call_operand.hbm [shape: f32[16,64], index: 7, kind: output, shape index: {}]
  %s8 = sld [smem:[#allocation0]]
  $region70: #{conv_forward.1} parent=0
    _
  %s10 = ssub.s32 1, %s8
  %s11 = scalar_select 0, %s10, %s8
  $region1: #{conv_forward.1} parent=0
    #allocation6 [shape = 'u8[65536]{0}', space=vmem, size = 0x10000, scoped, tag = 'input window, operand 0, single buffered']
    #allocation7 [shape = 's32[1]{0}', space=sflag, size = 0x4, scoped, tag = 'scoped memory for conv_forward.1']
    #allocation8 [shape = 's32[1]{0}', space=sflag, size = 0x4, scoped, tag = 'scoped memory for conv_forward.1']
    #allocation9 [shape = 'u8[512]{0}', space=vmem, size = 0x400, scoped, tag = 'input window, operand 1, single buffered']
    #allocation10 [shape = 's32[1]{0}', space=sflag, size = 0x4, scoped, tag = 'scoped memory for conv_forward.1']
    #allocation11 [shape = 'u8[512]{0}', space=vmem, size = 0x400, scoped, tag = 'input window, operand 3, single buffered']
    #allocation12 [shape = 'u8[512]{0}', space=vmem, size = 0x400, scoped, tag = 'input window, operand 4, single buffered']
    #allocation13 [shape = 's32[1]{0}', space=sflag, size = 0x4, scoped, tag = 'scoped memory for conv_forward.1']
    #allocation14 [shape = 'u8[65536]{0}', space=vmem, size = 0x10000, scoped, tag = 'input window, operand 5, single buffered']
    #allocation15 [shape = 'u8[512]{0}', space=vmem, size = 0x400, scoped, tag = 'input window, operand 6, single buffered']
    #allocation16 [shape = 's32[1]{0}', space=sflag, size = 0x4, scoped, tag = 'scoped memory for conv_forward.1']
    #allocation17 [shape = 'u8[8192]{0}', space=vmem, size = 0x2000, scoped, tag = 'output window, operand 0, single buffered']
    %12 = vsyncpa [#allocation7], 0
    %13 = vsyncpa [#allocation10], 0
    %14 = vsyncpa [#allocation13], 0
    %15 = vsyncpa [#allocation16], 0
    %16 = vsyncpa [#allocation8], 0
    // Predicated region
    $region2: #{conv_forward.1} parent=1 // pred_check
      _
    $region3: #{conv_forward.1} parent=1 // pred_check_branch
      %18 = sbr.rel (0) target = $region5
    $region4: #{conv_forward.1} parent=1 // pred_region
      %s20 = ssub.s32 2048, 2048
      %21 = vsyncadd [#allocation7], %s20
      %s22 = sshll.u32 [#allocation6], 4
      %s23 = int_to_ptr.vmem [resolvable:$true] %s22
      %28 = dma.hbm_to_vmem [thread:$0]  %s0, 2048, %s23, [#allocation7], 128, 128, 8
    $region5: #{conv_forward.1} parent=1 // pred_fallthru
      _
    // Predicated region
    $region6: #{conv_forward.1} parent=1 // pred_check
      _
    $region7: #{conv_forward.1} parent=1 // pred_check_branch
      %30 = sbr.rel (0) target = $region9
    $region8: #{conv_forward.1} parent=1 // pred_region
      %s32 = ssub.s32 16, 16
      %33 = vsyncadd [#allocation10], %s32
      %s35 = sshll.u32 [#allocation9], 4
      %s36 = int_to_ptr.vmem [resolvable:$true] %s35
      %38 = dma.hbm_to_vmem [thread:$0]  %s1, 16, %s36, [#allocation10]
    $region9: #{conv_forward.1} parent=1 // pred_fallthru
      _
    // Predicated region
    $region10: #{conv_forward.1} parent=1 // pred_check
      _
    $region11: #{conv_forward.1} parent=1 // pred_check_branch
      %40 = sbr.rel (0) target = $region13
    $region12: #{conv_forward.1} parent=1 // pred_region
      %s42 = ssub.s32 16, 16
      %43 = vsyncadd [#allocation10], %s42
      %s45 = sshll.u32 [#allocation11], 4
      %s46 = int_to_ptr.vmem [resolvable:$true] %s45
      %48 = dma.hbm_to_vmem [thread:$0]  %s3, 16, %s46, [#allocation10]
    $region13: #{conv_forward.1} parent=1 // pred_fallthru
      _
    // Predicated region
    $region14: #{conv_forward.1} parent=1 // pred_check
      _
    $region15: #{conv_forward.1} parent=1 // pred_check_branch
      %50 = sbr.rel (0) target = $region17
    $region16: #{conv_forward.1} parent=1 // pred_region
      %s52 = ssub.s32 16, 16
      %53 = vsyncadd [#allocation13], %s52
      %s55 = sshll.u32 [#allocation12], 4
      %s56 = int_to_ptr.vmem [resolvable:$true] %s55
      %58 = dma.hbm_to_vmem [thread:$0]  %s4, 16, %s56, [#allocation13]
    $region17: #{conv_forward.1} parent=1 // pred_fallthru
      _
    // Predicated region
    $region18: #{conv_forward.1} parent=1 // pred_check
      _
    $region19: #{conv_forward.1} parent=1 // pred_check_branch
      %60 = sbr.rel (0) target = $region21
    $region20: #{conv_forward.1} parent=1 // pred_region
      %s62 = ssub.s32 2048, 2048
      %63 = vsyncadd [#allocation13], %s62
      %s64 = sshll.u32 [#allocation14], 4
      %s65 = int_to_ptr.vmem [resolvable:$true] %s64
      %70 = dma.hbm_to_vmem [thread:$0]  %s5, 2048, %s65, [#allocation13], 128, 128, 8
    $region21: #{conv_forward.1} parent=1 // pred_fallthru
      _
    // Predicated region
    $region22: #{conv_forward.1} parent=1 // pred_check
      _
    $region23: #{conv_forward.1} parent=1 // pred_check_branch
      %72 = sbr.rel (0) target = $region25
    $region24: #{conv_forward.1} parent=1 // pred_region
      %s74 = ssub.s32 16, 16
      %75 = vsyncadd [#allocation16], %s74
      %s77 = sshll.u32 [#allocation15], 4
      %s78 = int_to_ptr.vmem [resolvable:$true] %s77
      %80 = dma.hbm_to_vmem [thread:$0]  %s6, 16, %s78, [#allocation16]
    $region25: #{conv_forward.1} parent=1 // pred_fallthru
      _
    // Predicated region
    $region26: #{conv_forward.1} parent=1 // pred_check
      _
    $region27: #{conv_forward.1} parent=1 // pred_check_branch
      %82 = sbr.rel (0) target = $region29
    $region28: #{conv_forward.1} parent=1 // pred_region
      %83 = dma.done [#allocation7], 2048
    $region29: #{conv_forward.1} parent=1 // pred_fallthru
      _
    // Predicated region
    $region30: #{conv_forward.1} parent=1 // pred_check
      _
    $region31: #{conv_forward.1} parent=1 // pred_check_branch
      %85 = sbr.rel (0) target = $region33
    $region32: #{conv_forward.1} parent=1 // pred_region
      %86 = dma.done [#allocation10], 16
    $region33: #{conv_forward.1} parent=1 // pred_fallthru
      _
    // Predicated region
    $region34: #{conv_forward.1} parent=1 // pred_check
      _
    $region35: #{conv_forward.1} parent=1 // pred_check_branch
      %88 = sbr.rel (0) target = $region37
    $region36: #{conv_forward.1} parent=1 // pred_region
      %89 = dma.done [#allocation10], 16
    $region37: #{conv_forward.1} parent=1 // pred_fallthru
      _
    // Predicated region
    $region38: #{conv_forward.1} parent=1 // pred_check
      _
    $region39: #{conv_forward.1} parent=1 // pred_check_branch
      %91 = sbr.rel (0) target = $region41
    $region40: #{conv_forward.1} parent=1 // pred_region
      %92 = dma.done [#allocation13], 16
    $region41: #{conv_forward.1} parent=1 // pred_fallthru
      _
    // Predicated region
    $region42: #{conv_forward.1} parent=1 // pred_check
      _
    $region43: #{conv_forward.1} parent=1 // pred_check_branch
      %94 = sbr.rel (0) target = $region45
    $region44: #{conv_forward.1} parent=1 // pred_region
      %95 = dma.done [#allocation13], 2048
    $region45: #{conv_forward.1} parent=1 // pred_fallthru
      _
    // Predicated region
    $region46: #{conv_forward.1} parent=1 // pred_check
      _
    $region47: #{conv_forward.1} parent=1 // pred_check_branch
      %97 = sbr.rel (0) target = $region49
    $region48: #{conv_forward.1} parent=1 // pred_region
      %98 = dma.done [#allocation16], 16
    $region49: #{conv_forward.1} parent=1 // pred_fallthru
      _
    %p100 = scmp.eq.s32.totalorder 0, 0
    // Predicated region
    $region50: #{conv_forward.1} parent=1 // pred_check
      %p101 = pneg %p100
    $region51: #{conv_forward.1} parent=1 // pred_check_branch
      %103 = sbr.rel (%p101) target = $region53
    $region52: #{conv_forward.1} parent=1 // pred_region
      // Predicated region
      $region54: #{conv_forward.1} parent=52 // pred_check
        _
      $region55: #{conv_forward.1} parent=52 // pred_check_branch
        %105 = sbr.rel target = $region57
      $region56: #{conv_forward.1} parent=52 // pred_region
        %106 = sst [smem:[#allocation20]] [#allocation19]
        %107 = sst [smem:[#allocation21]] [#allocation18]
      $region57: #{conv_forward.1} parent=52 // pred_fallthru
        _
      %109 = shalt.err (0)
      %s111 = sshll.u32 [#allocation2], 4
      %s112 = int_to_ptr.vmem [resolvable:$true] %s111
      %114 = dma.hbm_to_vmem [thread:$0]  %s2, 1024, %s112, [#allocation5]
      %115 = vst [vmem:[#allocation3] sm:$0xff] 0.0
      %116 = vst [vmem:[#allocation3 + $0x8] sm:$0xff] 0.0
      %117 = vst [vmem:[#allocation3 + $0x10] sm:$0xff] 0.0
      %118 = vst [vmem:[#allocation3 + $0x18] sm:$0xff] 0.0
      %119 = vst [vmem:[#allocation3 + $0x20] sm:$0xff] 0.0
      %120 = vst [vmem:[#allocation3 + $0x28] sm:$0xff] 0.0
      %121 = vst [vmem:[#allocation3 + $0x30] sm:$0xff] 0.0
      %122 = vst [vmem:[#allocation3 + $0x38] sm:$0xff] 0.0
      %123 = vst [vmem:[#allocation3 + $0x40] sm:$0xff] 0.0
      %124 = vst [vmem:[#allocation3 + $0x48] sm:$0xff] 0.0
      %125 = vst [vmem:[#allocation3 + $0x50] sm:$0xff] 0.0
      %126 = vst [vmem:[#allocation3 + $0x58] sm:$0xff] 0.0
      %127 = vst [vmem:[#allocation3 + $0x60] sm:$0xff] 0.0
      %128 = vst [vmem:[#allocation3 + $0x68] sm:$0xff] 0.0
      %129 = vst [vmem:[#allocation3 + $0x70] sm:$0xff] 0.0
      %130 = vst [vmem:[#allocation3 + $0x78] sm:$0xff] 0.0
      %s131 = smul.u32 4, 16
      %s132 = smul.u32 %s131, 1
      %s133 = sshll.u32 %s132, 4
      %134 = dma.done [#allocation5], %s133
    $region53: #{conv_forward.1} parent=1 // pred_fallthru
      _
    %v135 = vld [vmem:[#allocation6] sm:$0xff]
    %v136 = vld [vmem:[#allocation6 + $0x8] sm:$0xff]
    %v137 = vld [vmem:[#allocation6 + $0x10] sm:$0xff]
    %v138 = vld [vmem:[#allocation6 + $0x18] sm:$0xff]
    %v139 = vld [vmem:[#allocation6 + $0x20] sm:$0xff]
    %v140 = vld [vmem:[#allocation6 + $0x28] sm:$0xff]
    %v141 = vld [vmem:[#allocation6 + $0x30] sm:$0xff]
    %v142 = vld [vmem:[#allocation6 + $0x38] sm:$0xff]
    %v143 = vld [vmem:[#allocation6 + $0x40] sm:$0xff]
    %v144 = vld [vmem:[#allocation6 + $0x48] sm:$0xff]
    %v145 = vld [vmem:[#allocation6 + $0x50] sm:$0xff]
    %v146 = vld [vmem:[#allocation6 + $0x58] sm:$0xff]
    %v147 = vld [vmem:[#allocation6 + $0x60] sm:$0xff]
    %v148 = vld [vmem:[#allocation6 + $0x68] sm:$0xff]
    %v149 = vld [vmem:[#allocation6 + $0x70] sm:$0xff]
    %v150 = vld [vmem:[#allocation6 + $0x78] sm:$0xff]
    %v151 = vld [vmem:[#allocation9] sm:$0x1]
    %152 = vst [vmem:[#allocation4] sm:$0xff] 0.0
    %153 = vst [vmem:[#allocation4 + $0x8] sm:$0xff] 0.0
    %154 = vst [vmem:[#allocation4 + $0x10] sm:$0xff] 0.0
    %155 = vst [vmem:[#allocation4 + $0x18] sm:$0xff] 0.0
    %156 = vst [vmem:[#allocation4 + $0x20] sm:$0xff] 0.0
    %157 = vst [vmem:[#allocation4 + $0x28] sm:$0xff] 0.0
    %158 = vst [vmem:[#allocation4 + $0x30] sm:$0xff] 0.0
    %159 = vst [vmem:[#allocation4 + $0x38] sm:$0xff] 0.0
    %160 = vst [vmem:[#allocation4 + $0x40] sm:$0xff] 0.0
    %161 = vst [vmem:[#allocation4 + $0x48] sm:$0xff] 0.0
    %162 = vst [vmem:[#allocation4 + $0x50] sm:$0xff] 0.0
    %163 = vst [vmem:[#allocation4 + $0x58] sm:$0xff] 0.0
    %164 = vst [vmem:[#allocation4 + $0x60] sm:$0xff] 0.0
    %165 = vst [vmem:[#allocation4 + $0x68] sm:$0xff] 0.0
    %166 = vst [vmem:[#allocation4 + $0x70] sm:$0xff] 0.0
    %167 = vst [vmem:[#allocation4 + $0x78] sm:$0xff] 0.0
    %v168 = vlaneseq
    %v169 = vand.u32 %v168, 127
    %v170 = vstv 0
    %v171 = vsub.s32 %v135, %v170
    %v172 = vsub.s32 %v136, %v170
    %v173 = vsub.s32 %v137, %v170
    %v174 = vsub.s32 %v138, %v170
    %v175 = vsub.s32 %v139, %v170
    %v176 = vsub.s32 %v140, %v170
    %v177 = vsub.s32 %v141, %v170
    %v178 = vsub.s32 %v142, %v170
    %v179 = vsub.s32 %v143, %v170
    %v180 = vsub.s32 %v144, %v170
    %v181 = vsub.s32 %v145, %v170
    %v182 = vsub.s32 %v146, %v170
    %v183 = vsub.s32 %v147, %v170
    %v184 = vsub.s32 %v148, %v170
    %v185 = vsub.s32 %v149, %v170
    %v186 = vsub.s32 %v150, %v170
    %187 = vset.pattern.permute.xlu0 0
    %188 = vperm.xlu0 %187, %v171
    %v189 = vpop.permute.xlu0 %188
    %190 = vset.pattern.permute.xlu0 0
    %191 = vperm.xlu0 %190, %v172
    %v192 = vpop.permute.xlu0 %191
    %193 = vset.pattern.permute.xlu0 0
    %194 = vperm.xlu0 %193, %v173
    %v195 = vpop.permute.xlu0 %194
    %196 = vset.pattern.permute.xlu0 0
    %197 = vperm.xlu0 %196, %v174
    %v198 = vpop.permute.xlu0 %197
    %199 = vset.pattern.permute.xlu0 0
    %200 = vperm.xlu0 %199, %v175
    %v201 = vpop.permute.xlu0 %200
    %202 = vset.pattern.permute.xlu0 0
    %203 = vperm.xlu0 %202, %v176
    %v204 = vpop.permute.xlu0 %203
    %205 = vset.pattern.permute.xlu0 0
    %206 = vperm.xlu0 %205, %v177
    %v207 = vpop.permute.xlu0 %206
    %208 = vset.pattern.permute.xlu0 0
    %209 = vperm.xlu0 %208, %v178
    %v210 = vpop.permute.xlu0 %209
    %211 = vset.pattern.permute.xlu0 0
    %212 = vperm.xlu0 %211, %v179
    %v213 = vpop.permute.xlu0 %212
    %214 = vset.pattern.permute.xlu0 0
    %215 = vperm.xlu0 %214, %v180
    %v216 = vpop.permute.xlu0 %215
    %217 = vset.pattern.permute.xlu0 0
    %218 = vperm.xlu0 %217, %v181
    %v219 = vpop.permute.xlu0 %218
    %220 = vset.pattern.permute.xlu0 0
    %221 = vperm.xlu0 %220, %v182
    %v222 = vpop.permute.xlu0 %221
    %223 = vset.pattern.permute.xlu0 0
    %224 = vperm.xlu0 %223, %v183
    %v225 = vpop.permute.xlu0 %224
    %226 = vset.pattern.permute.xlu0 0
    %227 = vperm.xlu0 %226, %v184
    %v228 = vpop.permute.xlu0 %227
    %229 = vset.pattern.permute.xlu0 0
    %230 = vperm.xlu0 %229, %v185
    %v231 = vpop.permute.xlu0 %230
    %232 = vset.pattern.permute.xlu0 0
    %233 = vperm.xlu0 %232, %v186
    %v234 = vpop.permute.xlu0 %233
    %vm235 = vcmp.eq.s32.totalorder %v169, %v189
    %vm236 = vcmp.eq.s32.totalorder %v169, %v192
    %vm237 = vcmp.eq.s32.totalorder %v169, %v195
    %vm238 = vcmp.eq.s32.totalorder %v169, %v198
    %vm239 = vcmp.eq.s32.totalorder %v169, %v201
    %vm240 = vcmp.eq.s32.totalorder %v169, %v204
    %vm241 = vcmp.eq.s32.totalorder %v169, %v207
    %vm242 = vcmp.eq.s32.totalorder %v169, %v210
    %vm243 = vcmp.eq.s32.totalorder %v169, %v213
    %vm244 = vcmp.eq.s32.totalorder %v169, %v216
    %vm245 = vcmp.eq.s32.totalorder %v169, %v219
    %vm246 = vcmp.eq.s32.totalorder %v169, %v222
    %vm247 = vcmp.eq.s32.totalorder %v169, %v225
    %vm248 = vcmp.eq.s32.totalorder %v169, %v228
    %vm249 = vcmp.eq.s32.totalorder %v169, %v231
    %vm250 = vcmp.eq.s32.totalorder %v169, %v234
    %v251 = vsel %vm235, 1, 0
    %v252 = vsel %vm236, 1, 0
    %v253 = vsel %vm237, 1, 0
    %v254 = vsel %vm238, 1, 0
    %v255 = vsel %vm239, 1, 0
    %v256 = vsel %vm240, 1, 0
    %v257 = vsel %vm241, 1, 0
    %v258 = vsel %vm242, 1, 0
    %v259 = vsel %vm243, 1, 0
    %v260 = vsel %vm244, 1, 0
    %v261 = vsel %vm245, 1, 0
    %v262 = vsel %vm246, 1, 0
    %v263 = vsel %vm247, 1, 0
    %v264 = vsel %vm248, 1, 0
    %v265 = vsel %vm249, 1, 0
    %v266 = vsel %vm250, 1, 0
    %v267 = vcvt.s32.f32 %v251
    %v268 = vcvt.s32.f32 %v252
    %v269 = vcvt.s32.f32 %v253
    %v270 = vcvt.s32.f32 %v254
    %v271 = vcvt.s32.f32 %v255
    %v272 = vcvt.s32.f32 %v256
    %v273 = vcvt.s32.f32 %v257
    %v274 = vcvt.s32.f32 %v258
    %v275 = vcvt.s32.f32 %v259
    %v276 = vcvt.s32.f32 %v260
    %v277 = vcvt.s32.f32 %v261
    %v278 = vcvt.s32.f32 %v262
    %v279 = vcvt.s32.f32 %v263
    %v280 = vcvt.s32.f32 %v264
    %v281 = vcvt.s32.f32 %v265
    %v282 = vcvt.s32.f32 %v266
    %v283 = vpack.c.bf16 %v268, %v267
    %v284 = vpack.c.bf16 %v270, %v269
    %v285 = vpack.c.bf16 %v272, %v271
    %v286 = vpack.c.bf16 %v274, %v273
    %v287 = vpack.c.bf16 %v276, %v275
    %v288 = vpack.c.bf16 %v278, %v277
    %v289 = vpack.c.bf16 %v280, %v279
    %v290 = vpack.c.bf16 %v282, %v281
    %v291 = vld [vmem:[#allocation4] sm:$0xff]
    %v292 = vld [vmem:[#allocation4 + $0x8] sm:$0xff]
    %v293 = vld [vmem:[#allocation4 + $0x10] sm:$0xff]
    %v294 = vld [vmem:[#allocation4 + $0x18] sm:$0xff]
    %v295 = vld [vmem:[#allocation4 + $0x20] sm:$0xff]
    %v296 = vld [vmem:[#allocation4 + $0x28] sm:$0xff]
    %v297 = vld [vmem:[#allocation4 + $0x30] sm:$0xff]
    %v298 = vld [vmem:[#allocation4 + $0x38] sm:$0xff]
    %v299 = vld [vmem:[#allocation4 + $0x40] sm:$0xff]
    %v300 = vld [vmem:[#allocation4 + $0x48] sm:$0xff]
    %v301 = vld [vmem:[#allocation4 + $0x50] sm:$0xff]
    %v302 = vld [vmem:[#allocation4 + $0x58] sm:$0xff]
    %v303 = vld [vmem:[#allocation4 + $0x60] sm:$0xff]
    %v304 = vld [vmem:[#allocation4 + $0x68] sm:$0xff]
    %v305 = vld [vmem:[#allocation4 + $0x70] sm:$0xff]
    %v306 = vld [vmem:[#allocation4 + $0x78] sm:$0xff]
    %v307 = vld [vmem:[#allocation2] sm:$0xff]
    %v308 = vld [vmem:[#allocation2 + $0x8] sm:$0xff]
    %v309 = vld [vmem:[#allocation2 + $0x10] sm:$0xff]
    %v310 = vld [vmem:[#allocation2 + $0x18] sm:$0xff]
    %v311 = vld [vmem:[#allocation2 + $0x20] sm:$0xff]
    %v312 = vld [vmem:[#allocation2 + $0x28] sm:$0xff]
    %v313 = vld [vmem:[#allocation2 + $0x30] sm:$0xff]
    %v314 = vld [vmem:[#allocation2 + $0x38] sm:$0xff]
    %315 = vmatprep.subr.bf16.mxu0 0
    %316 = vmatpush1.bf16.msra.mxu0 %v307
    %317 = vmatprep.subr.bf16.mxu0 0
    %318 = vmatpush1.bf16.msra.mxu0 %v308
    %319 = vmatprep.subr.bf16.mxu0 0
    %320 = vmatpush1.bf16.msra.mxu0 %v309
    %321 = vmatprep.subr.bf16.mxu0 0
    %322 = vmatpush1.bf16.msra.mxu0 %v310
    %323 = vmatprep.subr.bf16.mxu0 0
    %324 = vmatpush1.bf16.msra.mxu0 %v311
    %325 = vmatprep.subr.bf16.mxu0 0
    %326 = vmatpush1.bf16.msra.mxu0 %v312
    %327 = vmatprep.subr.bf16.mxu0 0
    %328 = vmatpush1.bf16.msra.mxu0 %v313
    %329 = vmatprep.subr.bf16.mxu0 0
    %330 = vmatpush1.bf16.msra.mxu0 %v314
    %331 = vmatprep.subr.bf16.mxu0 0
    %332 = vmatpush1.bf16.msra.mxu0 0
    %333 = vmatprep.subr.bf16.mxu0 0
    %334 = vmatpush1.bf16.msra.mxu0 0
    %335 = vmatprep.subr.bf16.mxu0 0
    %336 = vmatpush1.bf16.msra.mxu0 0
    %337 = vmatprep.subr.bf16.mxu0 0
    %338 = vmatpush1.bf16.msra.mxu0 0
    %339 = vmatprep.subr.bf16.mxu0 0
    %340 = vmatpush1.bf16.msra.mxu0 0
    %341 = vmatprep.subr.bf16.mxu0 0
    %342 = vmatpush1.bf16.msra.mxu0 0
    %343 = vmatprep.subr.bf16.mxu0 0
    %344 = vmatpush1.bf16.msra.mxu0 0
    %345 = vmatprep.subr.bf16.mxu0 0
    %346 = vmatpush1.bf16.msra.mxu0 0
    %347 = vmatprep.mubr.bf16.mxu0 0
    %348 = vmatmul.mubr.bf16.gmra.mrb[0].mxu0 %v283
    %v349 = vpop.f32.mrb[0].mxu0
    %v350 = vadd.f32 0.0, %v349
    %v351 = vpop.f32.mrb[0].mxu0
    %v352 = vpop.f32.mrb[0].mxu0
    %v353 = vadd.f32 0.0, %v352
    %v354 = vpop.f32.mrb[0].mxu0
    %355 = vmatprep.mubr.bf16.mxu0 0
    %356 = vmatmul.mubr.bf16.gmra.mrb[0].mxu0 %v284
    %v357 = vpop.f32.mrb[0].mxu0
    %v358 = vadd.f32 0.0, %v357
    %v359 = vpop.f32.mrb[0].mxu0
    %v360 = vpop.f32.mrb[0].mxu0
    %v361 = vadd.f32 0.0, %v360
    %v362 = vpop.f32.mrb[0].mxu0
    %363 = vmatprep.mubr.bf16.mxu0 0
    %364 = vmatmul.mubr.bf16.gmra.mrb[0].mxu0 %v285
    %v365 = vpop.f32.mrb[0].mxu0
    %v366 = vadd.f32 0.0, %v365
    %v367 = vpop.f32.mrb[0].mxu0
    %v368 = vpop.f32.mrb[0].mxu0
    %v369 = vadd.f32 0.0, %v368
    %v370 = vpop.f32.mrb[0].mxu0
    %371 = vmatprep.mubr.bf16.mxu0 0
    %372 = vmatmul.mubr.bf16.gmra.mrb[0].mxu0 %v286
    %v373 = vpop.f32.mrb[0].mxu0
    %v374 = vadd.f32 0.0, %v373
    %v375 = vpop.f32.mrb[0].mxu0
    %v376 = vpop.f32.mrb[0].mxu0
    %v377 = vadd.f32 0.0, %v376
    %v378 = vpop.f32.mrb[0].mxu0
    %379 = vmatprep.mubr.bf16.mxu0 0
    %380 = vmatmul.mubr.bf16.gmra.mrb[0].mxu0 %v287
    %v381 = vpop.f32.mrb[0].mxu0
    %v382 = vadd.f32 0.0, %v381
    %v383 = vpop.f32.mrb[0].mxu0
    %v384 = vpop.f32.mrb[0].mxu0
    %v385 = vadd.f32 0.0, %v384
    %v386 = vpop.f32.mrb[0].mxu0
    %387 = vmatprep.mubr.bf16.mxu0 0
    %388 = vmatmul.mubr.bf16.gmra.mrb[0].mxu0 %v288
    %v389 = vpop.f32.mrb[0].mxu0
    %v390 = vadd.f32 0.0, %v389
    %v391 = vpop.f32.mrb[0].mxu0
    %v392 = vpop.f32.mrb[0].mxu0
    %v393 = vadd.f32 0.0, %v392
    %v394 = vpop.f32.mrb[0].mxu0
    %395 = vmatprep.mubr.bf16.mxu0 0
    %396 = vmatmul.mubr.bf16.gmra.mrb[0].mxu0 %v289
    %v397 = vpop.f32.mrb[0].mxu0
    %v398 = vadd.f32 0.0, %v397
    %v399 = vpop.f32.mrb[0].mxu0
    %v400 = vpop.f32.mrb[0].mxu0
    %v401 = vadd.f32 0.0, %v400
    %v402 = vpop.f32.mrb[0].mxu0
    %403 = vmatprep.mubr.bf16.mxu0 0
    %404 = vmatmul.mubr.bf16.gmra.mrb[0].mxu0 %v290
    %v405 = vpop.f32.mrb[0].mxu0
    %v406 = vadd.f32 0.0, %v405
    %v407 = vpop.f32.mrb[0].mxu0
    %v408 = vpop.f32.mrb[0].mxu0
    %v409 = vadd.f32 0.0, %v408
    %v410 = vpop.f32.mrb[0].mxu0
    %411 = vdwg.mxu0
    %v412 = vadd.f32 %v291, %v350
    %v413 = vadd.f32 %v292, %v353
    %v414 = vadd.f32 %v293, %v358
    %v415 = vadd.f32 %v294, %v361
    %v416 = vadd.f32 %v295, %v366
    %v417 = vadd.f32 %v296, %v369
    %v418 = vadd.f32 %v297, %v374
    %v419 = vadd.f32 %v298, %v377
    %v420 = vadd.f32 %v299, %v382
    %v421 = vadd.f32 %v300, %v385
    %v422 = vadd.f32 %v301, %v390
    %v423 = vadd.f32 %v302, %v393
    %v424 = vadd.f32 %v303, %v398
    %v425 = vadd.f32 %v304, %v401
    %v426 = vadd.f32 %v305, %v406
    %v427 = vadd.f32 %v306, %v409
    %428 = vst [vmem:[#allocation4] sm:$0xff] %v412
    %429 = vst [vmem:[#allocation4 + $0x8] sm:$0xff] %v413
    %430 = vst [vmem:[#allocation4 + $0x10] sm:$0xff] %v414
    %431 = vst [vmem:[#allocation4 + $0x18] sm:$0xff] %v415
    %432 = vst [vmem:[#allocation4 + $0x20] sm:$0xff] %v416
    %433 = vst [vmem:[#allocation4 + $0x28] sm:$0xff] %v417
    %434 = vst [vmem:[#allocation4 + $0x30] sm:$0xff] %v418
    %435 = vst [vmem:[#allocation4 + $0x38] sm:$0xff] %v419
    %436 = vst [vmem:[#allocation4 + $0x40] sm:$0xff] %v420
    %437 = vst [vmem:[#allocation4 + $0x48] sm:$0xff] %v421
    %438 = vst [vmem:[#allocation4 + $0x50] sm:$0xff] %v422
    %439 = vst [vmem:[#allocation4 + $0x58] sm:$0xff] %v423
    %440 = vst [vmem:[#allocation4 + $0x60] sm:$0xff] %v424
    %441 = vst [vmem:[#allocation4 + $0x68] sm:$0xff] %v425
    %442 = vst [vmem:[#allocation4 + $0x70] sm:$0xff] %v426
    %443 = vst [vmem:[#allocation4 + $0x78] sm:$0xff] %v427
    %v444 = vld [vmem:[#allocation4] sm:$0xff]
    %v445 = vld [vmem:[#allocation4 + $0x8] sm:$0xff]
    %v446 = vld [vmem:[#allocation4 + $0x10] sm:$0xff]
    %v447 = vld [vmem:[#allocation4 + $0x18] sm:$0xff]
    %v448 = vld [vmem:[#allocation4 + $0x20] sm:$0xff]
    %v449 = vld [vmem:[#allocation4 + $0x28] sm:$0xff]
    %v450 = vld [vmem:[#allocation4 + $0x30] sm:$0xff]
    %v451 = vld [vmem:[#allocation4 + $0x38] sm:$0xff]
    %v452 = vld [vmem:[#allocation4 + $0x40] sm:$0xff]
    %v453 = vld [vmem:[#allocation4 + $0x48] sm:$0xff]
    %v454 = vld [vmem:[#allocation4 + $0x50] sm:$0xff]
    %v455 = vld [vmem:[#allocation4 + $0x58] sm:$0xff]
    %v456 = vld [vmem:[#allocation4 + $0x60] sm:$0xff]
    %v457 = vld [vmem:[#allocation4 + $0x68] sm:$0xff]
    %v458 = vld [vmem:[#allocation4 + $0x70] sm:$0xff]
    %v459 = vld [vmem:[#allocation4 + $0x78] sm:$0xff]
    %v460 = vpack.c.bf16 %v445, %v444
    %v461 = vpack.c.bf16 %v447, %v446
    %v462 = vpack.c.bf16 %v449, %v448
    %v463 = vpack.c.bf16 %v451, %v450
    %v464 = vpack.c.bf16 %v453, %v452
    %v465 = vpack.c.bf16 %v455, %v454
    %v466 = vpack.c.bf16 %v457, %v456
    %v467 = vpack.c.bf16 %v459, %v458
    %v468 = vlaneseq
    %v469 = vshrl.u32 %v468, 7
    %v470 = vadd.s32 %v469, 8
    %v471 = vadd.s32 %v469, 16
    %v472 = vadd.s32 %v469, 24
    %v473 = vadd.s32 %v469, 32
    %v474 = vadd.s32 %v469, 40
    %v475 = vadd.s32 %v469, 48
    %v476 = vadd.s32 %v469, 56
    %v477 = vadd.s32 %v469, 64
    %v478 = vadd.s32 %v469, 72
    %v479 = vadd.s32 %v469, 80
    %v480 = vadd.s32 %v469, 88
    %v481 = vadd.s32 %v469, 96
    %v482 = vadd.s32 %v469, 104
    %v483 = vadd.s32 %v469, 112
    %v484 = vadd.s32 %v469, 120
    %v485 = vsub.s32 %v151, %v170
    %v486 = vlaneseq
    %v487 = vshrl.u32 %v486, 7
    %v488 = vsub.s32 0, %v487
    %v489 = vrot.slane %v485, %v488
    %vm490 = vcmp.eq.s32.totalorder %v469, %v489
    %vm491 = vcmp.eq.s32.totalorder %v470, %v489
    %vm492 = vcmp.eq.s32.totalorder %v471, %v489
    %vm493 = vcmp.eq.s32.totalorder %v472, %v489
    %vm494 = vcmp.eq.s32.totalorder %v473, %v489
    %vm495 = vcmp.eq.s32.totalorder %v474, %v489
    %vm496 = vcmp.eq.s32.totalorder %v475, %v489
    %vm497 = vcmp.eq.s32.totalorder %v476, %v489
    %vm498 = vcmp.eq.s32.totalorder %v477, %v489
    %vm499 = vcmp.eq.s32.totalorder %v478, %v489
    %vm500 = vcmp.eq.s32.totalorder %v479, %v489
    %vm501 = vcmp.eq.s32.totalorder %v480, %v489
    %vm502 = vcmp.eq.s32.totalorder %v481, %v489
    %vm503 = vcmp.eq.s32.totalorder %v482, %v489
    %vm504 = vcmp.eq.s32.totalorder %v483, %v489
    %vm505 = vcmp.eq.s32.totalorder %v484, %v489
    %v506 = vsel %vm490, 1, 0
    %v507 = vsel %vm491, 1, 0
    %v508 = vsel %vm492, 1, 0
    %v509 = vsel %vm493, 1, 0
    %v510 = vsel %vm494, 1, 0
    %v511 = vsel %vm495, 1, 0
    %v512 = vsel %vm496, 1, 0
    %v513 = vsel %vm497, 1, 0
    %v514 = vsel %vm498, 1, 0
    %v515 = vsel %vm499, 1, 0
    %v516 = vsel %vm500, 1, 0
    %v517 = vsel %vm501, 1, 0
    %v518 = vsel %vm502, 1, 0
    %v519 = vsel %vm503, 1, 0
    %v520 = vsel %vm504, 1, 0
    %v521 = vsel %vm505, 1, 0
    %v522 = vcvt.s32.f32 %v506
    %v523 = vcvt.s32.f32 %v507
    %v524 = vcvt.s32.f32 %v508
    %v525 = vcvt.s32.f32 %v509
    %v526 = vcvt.s32.f32 %v510
    %v527 = vcvt.s32.f32 %v511
    %v528 = vcvt.s32.f32 %v512
    %v529 = vcvt.s32.f32 %v513
    %v530 = vcvt.s32.f32 %v514
    %v531 = vcvt.s32.f32 %v515
    %v532 = vcvt.s32.f32 %v516
    %v533 = vcvt.s32.f32 %v517
    %v534 = vcvt.s32.f32 %v518
    %v535 = vcvt.s32.f32 %v519
    %v536 = vcvt.s32.f32 %v520
    %v537 = vcvt.s32.f32 %v521
    %v538 = vpack.c.bf16 %v523, %v522
    %v539 = vpack.c.bf16 %v525, %v524
    %v540 = vpack.c.bf16 %v527, %v526
    %v541 = vpack.c.bf16 %v529, %v528
    %v542 = vpack.c.bf16 %v531, %v530
    %v543 = vpack.c.bf16 %v533, %v532
    %v544 = vpack.c.bf16 %v535, %v534
    %v545 = vpack.c.bf16 %v537, %v536
    %v546 = vld [vmem:[#allocation3] sm:$0xff]
    %v547 = vld [vmem:[#allocation3 + $0x8] sm:$0xff]
    %v548 = vld [vmem:[#allocation3 + $0x10] sm:$0xff]
    %v549 = vld [vmem:[#allocation3 + $0x18] sm:$0xff]
    %v550 = vld [vmem:[#allocation3 + $0x20] sm:$0xff]
    %v551 = vld [vmem:[#allocation3 + $0x28] sm:$0xff]
    %v552 = vld [vmem:[#allocation3 + $0x30] sm:$0xff]
    %v553 = vld [vmem:[#allocation3 + $0x38] sm:$0xff]
    %v554 = vld [vmem:[#allocation3 + $0x40] sm:$0xff]
    %v555 = vld [vmem:[#allocation3 + $0x48] sm:$0xff]
    %v556 = vld [vmem:[#allocation3 + $0x50] sm:$0xff]
    %v557 = vld [vmem:[#allocation3 + $0x58] sm:$0xff]
    %v558 = vld [vmem:[#allocation3 + $0x60] sm:$0xff]
    %v559 = vld [vmem:[#allocation3 + $0x68] sm:$0xff]
    %v560 = vld [vmem:[#allocation3 + $0x70] sm:$0xff]
    %v561 = vld [vmem:[#allocation3 + $0x78] sm:$0xff]
    %562 = vmatprep.subr.bf16.mxu0 0
    %563 = vmatpush1.bf16.msra.mxu0 %v460
    %564 = vmatprep.subr.bf16.mxu0 0
    %565 = vmatpush1.bf16.msra.mxu0 %v461
    %566 = vmatprep.subr.bf16.mxu0 0
    %567 = vmatpush1.bf16.msra.mxu0 %v462
    %568 = vmatprep.subr.bf16.mxu0 0
    %569 = vmatpush1.bf16.msra.mxu0 %v463
    %570 = vmatprep.subr.bf16.mxu0 0
    %571 = vmatpush1.bf16.msra.mxu0 %v464
    %572 = vmatprep.subr.bf16.mxu0 0
    %573 = vmatpush1.bf16.msra.mxu0 %v465
    %574 = vmatprep.subr.bf16.mxu0 0
    %575 = vmatpush1.bf16.msra.mxu0 %v466
    %576 = vmatprep.subr.bf16.mxu0 0
    %577 = vmatpush1.bf16.msra.mxu0 %v467
    %578 = vmatprep.subr.bf16.mxu0 0
    %579 = vmatpush1.bf16.msra.mxu0 0
    %580 = vmatprep.subr.bf16.mxu0 0
    %581 = vmatpush1.bf16.msra.mxu0 0
    %582 = vmatprep.subr.bf16.mxu0 0
    %583 = vmatpush1.bf16.msra.mxu0 0
    %584 = vmatprep.subr.bf16.mxu0 0
    %585 = vmatpush1.bf16.msra.mxu0 0
    %586 = vmatprep.subr.bf16.mxu0 0
    %587 = vmatpush1.bf16.msra.mxu0 0
    %588 = vmatprep.subr.bf16.mxu0 0
    %589 = vmatpush1.bf16.msra.mxu0 0
    %590 = vmatprep.subr.bf16.mxu0 0
    %591 = vmatpush1.bf16.msra.mxu0 0
    %592 = vmatprep.subr.bf16.mxu0 0
    %593 = vmatpush1.bf16.msra.mxu0 0
    %594 = vmatprep.mubr.bf16.mxu0 0
    %595 = vmatmul.mubr.bf16.gmra.mrb[0].mxu0 %v538
    %v596 = vpop.f32.mrb[0].mxu0
    %v597 = vadd.f32 0.0, %v596
    %v598 = vpop.f32.mrb[0].mxu0
    %v599 = vpop.f32.mrb[0].mxu0
    %v600 = vadd.f32 0.0, %v599
    %v601 = vpop.f32.mrb[0].mxu0
    %602 = vmatprep.mubr.bf16.mxu0 0
    %603 = vmatmul.mubr.bf16.gmra.mrb[0].mxu0 %v539
    %v604 = vpop.f32.mrb[0].mxu0
    %v605 = vadd.f32 0.0, %v604
    %v606 = vpop.f32.mrb[0].mxu0
    %v607 = vpop.f32.mrb[0].mxu0
    %v608 = vadd.f32 0.0, %v607
    %v609 = vpop.f32.mrb[0].mxu0
    %610 = vmatprep.mubr.bf16.mxu0 0
    %611 = vmatmul.mubr.bf16.gmra.mrb[0].mxu0 %v540
    %v612 = vpop.f32.mrb[0].mxu0
    %v613 = vadd.f32 0.0, %v612
    %v614 = vpop.f32.mrb[0].mxu0
    %v615 = vpop.f32.mrb[0].mxu0
    %v616 = vadd.f32 0.0, %v615
    %v617 = vpop.f32.mrb[0].mxu0
    %618 = vmatprep.mubr.bf16.mxu0 0
    %619 = vmatmul.mubr.bf16.gmra.mrb[0].mxu0 %v541
    %v620 = vpop.f32.mrb[0].mxu0
    %v621 = vadd.f32 0.0, %v620
    %v622 = vpop.f32.mrb[0].mxu0
    %v623 = vpop.f32.mrb[0].mxu0
    %v624 = vadd.f32 0.0, %v623
    %v625 = vpop.f32.mrb[0].mxu0
    %626 = vmatprep.mubr.bf16.mxu0 0
    %627 = vmatmul.mubr.bf16.gmra.mrb[0].mxu0 %v542
    %v628 = vpop.f32.mrb[0].mxu0
    %v629 = vadd.f32 0.0, %v628
    %v630 = vpop.f32.mrb[0].mxu0
    %v631 = vpop.f32.mrb[0].mxu0
    %v632 = vadd.f32 0.0, %v631
    %v633 = vpop.f32.mrb[0].mxu0
    %634 = vmatprep.mubr.bf16.mxu0 0
    %635 = vmatmul.mubr.bf16.gmra.mrb[0].mxu0 %v543
    %v636 = vpop.f32.mrb[0].mxu0
    %v637 = vadd.f32 0.0, %v636
    %v638 = vpop.f32.mrb[0].mxu0
    %v639 = vpop.f32.mrb[0].mxu0
    %v640 = vadd.f32 0.0, %v639
    %v641 = vpop.f32.mrb[0].mxu0
    %642 = vmatprep.mubr.bf16.mxu0 0
    %643 = vmatmul.mubr.bf16.gmra.mrb[0].mxu0 %v544
    %v644 = vpop.f32.mrb[0].mxu0
    %v645 = vadd.f32 0.0, %v644
    %v646 = vpop.f32.mrb[0].mxu0
    %v647 = vpop.f32.mrb[0].mxu0
    %v648 = vadd.f32 0.0, %v647
    %v649 = vpop.f32.mrb[0].mxu0
    %650 = vmatprep.mubr.bf16.mxu0 0
    %651 = vmatmul.mubr.bf16.gmra.mrb[0].mxu0 %v545
    %v652 = vpop.f32.mrb[0].mxu0
    %v653 = vadd.f32 0.0, %v652
    %v654 = vpop.f32.mrb[0].mxu0
    %v655 = vpop.f32.mrb[0].mxu0
    %v656 = vadd.f32 0.0, %v655
    %v657 = vpop.f32.mrb[0].mxu0
    %658 = vdwg.mxu0
    %v659 = vadd.f32 %v546, %v597
    %v660 = vadd.f32 %v547, %v600
    %v661 = vadd.f32 %v548, %v605
    %v662 = vadd.f32 %v549, %v608
    %v663 = vadd.f32 %v550, %v613
    %v664 = vadd.f32 %v551, %v616
    %v665 = vadd.f32 %v552, %v621
    %v666 = vadd.f32 %v553, %v624
    %v667 = vadd.f32 %v554, %v629
    %v668 = vadd.f32 %v555, %v632
    %v669 = vadd.f32 %v556, %v637
    %v670 = vadd.f32 %v557, %v640
    %v671 = vadd.f32 %v558, %v645
    %v672 = vadd.f32 %v559, %v648
    %v673 = vadd.f32 %v560, %v653
    %v674 = vadd.f32 %v561, %v656
    %675 = vst [vmem:[#allocation3] sm:$0xff] %v659
    %676 = vst [vmem:[#allocation3 + $0x8] sm:$0xff] %v660
    %677 = vst [vmem:[#allocation3 + $0x10] sm:$0xff] %v661
    %678 = vst [vmem:[#allocation3 + $0x18] sm:$0xff] %v662
    %679 = vst [vmem:[#allocation3 + $0x20] sm:$0xff] %v663
    %680 = vst [vmem:[#allocation3 + $0x28] sm:$0xff] %v664
    %681 = vst [vmem:[#allocation3 + $0x30] sm:$0xff] %v665
    %682 = vst [vmem:[#allocation3 + $0x38] sm:$0xff] %v666
    %683 = vst [vmem:[#allocation3 + $0x40] sm:$0xff] %v667
    %684 = vst [vmem:[#allocation3 + $0x48] sm:$0xff] %v668
    %685 = vst [vmem:[#allocation3 + $0x50] sm:$0xff] %v669
    %686 = vst [vmem:[#allocation3 + $0x58] sm:$0xff] %v670
    %687 = vst [vmem:[#allocation3 + $0x60] sm:$0xff] %v671
    %688 = vst [vmem:[#allocation3 + $0x68] sm:$0xff] %v672
    %689 = vst [vmem:[#allocation3 + $0x70] sm:$0xff] %v673
    %690 = vst [vmem:[#allocation3 + $0x78] sm:$0xff] %v674
    // Predicated region
    $region58: #{conv_forward.1} parent=1 // pred_check
      %p691 = pneg %p100
    $region59: #{conv_forward.1} parent=1 // pred_check_branch
      %693 = sbr.rel (%p691) target = $region61
    $region60: #{conv_forward.1} parent=1 // pred_region
      %v694 = vld [vmem:[#allocation3] sm:$0xff]
      %v695 = vld [vmem:[#allocation3 + $0x8] sm:$0xff]
      %v696 = vld [vmem:[#allocation3 + $0x10] sm:$0xff]
      %v697 = vld [vmem:[#allocation3 + $0x18] sm:$0xff]
      %v698 = vld [vmem:[#allocation3 + $0x20] sm:$0xff]
      %v699 = vld [vmem:[#allocation3 + $0x28] sm:$0xff]
      %v700 = vld [vmem:[#allocation3 + $0x30] sm:$0xff]
      %v701 = vld [vmem:[#allocation3 + $0x38] sm:$0xff]
      %v702 = vld [vmem:[#allocation3 + $0x40] sm:$0xff]
      %v703 = vld [vmem:[#allocation3 + $0x48] sm:$0xff]
      %v704 = vld [vmem:[#allocation3 + $0x50] sm:$0xff]
      %v705 = vld [vmem:[#allocation3 + $0x58] sm:$0xff]
      %v706 = vld [vmem:[#allocation3 + $0x60] sm:$0xff]
      %v707 = vld [vmem:[#allocation3 + $0x68] sm:$0xff]
      %v708 = vld [vmem:[#allocation3 + $0x70] sm:$0xff]
      %v709 = vld [vmem:[#allocation3 + $0x78] sm:$0xff]
      %v710 = vmax.f32 %v694, 1.0
      %v711 = vmax.f32 %v695, 1.0
      %v712 = vmax.f32 %v696, 1.0
      %v713 = vmax.f32 %v697, 1.0
      %v714 = vmax.f32 %v698, 1.0
      %v715 = vmax.f32 %v699, 1.0
      %v716 = vmax.f32 %v700, 1.0
      %v717 = vmax.f32 %v701, 1.0
      %v718 = vmax.f32 %v702, 1.0
      %v719 = vmax.f32 %v703, 1.0
      %v720 = vmax.f32 %v704, 1.0
      %v721 = vmax.f32 %v705, 1.0
      %v722 = vmax.f32 %v706, 1.0
      %v723 = vmax.f32 %v707, 1.0
      %v724 = vmax.f32 %v708, 1.0
      %v725 = vmax.f32 %v709, 1.0
      %727 = vset.pattern.permute.xlu0 64
      %728 = vperm.xlu0 %727, %v710
      %v729 = vpop.permute.xlu0 %728
      %732 = vset.pattern.permute.xlu0 64
      %733 = vperm.xlu0 %732, %v711
      %v734 = vpop.permute.xlu0 %733
      %737 = vset.pattern.permute.xlu0 64
      %738 = vperm.xlu0 %737, %v712
      %v739 = vpop.permute.xlu0 %738
      %742 = vset.pattern.permute.xlu0 64
      %743 = vperm.xlu0 %742, %v713
      %v744 = vpop.permute.xlu0 %743
      %747 = vset.pattern.permute.xlu0 64
      %748 = vperm.xlu0 %747, %v714
      %v749 = vpop.permute.xlu0 %748
      %752 = vset.pattern.permute.xlu0 64
      %753 = vperm.xlu0 %752, %v715
      %v754 = vpop.permute.xlu0 %753
      %757 = vset.pattern.permute.xlu0 64
      %758 = vperm.xlu0 %757, %v716
      %v759 = vpop.permute.xlu0 %758
      %762 = vset.pattern.permute.xlu0 64
      %763 = vperm.xlu0 %762, %v717
      %v764 = vpop.permute.xlu0 %763
      %767 = vset.pattern.permute.xlu0 64
      %768 = vperm.xlu0 %767, %v718
      %v769 = vpop.permute.xlu0 %768
      %772 = vset.pattern.permute.xlu0 64
      %773 = vperm.xlu0 %772, %v719
      %v774 = vpop.permute.xlu0 %773
      %777 = vset.pattern.permute.xlu0 64
      %778 = vperm.xlu0 %777, %v720
      %v779 = vpop.permute.xlu0 %778
      %782 = vset.pattern.permute.xlu0 64
      %783 = vperm.xlu0 %782, %v721
      %v784 = vpop.permute.xlu0 %783
      %787 = vset.pattern.permute.xlu0 64
      %788 = vperm.xlu0 %787, %v722
      %v789 = vpop.permute.xlu0 %788
      %792 = vset.pattern.permute.xlu0 64
      %793 = vperm.xlu0 %792, %v723
      %v794 = vpop.permute.xlu0 %793
      %797 = vset.pattern.permute.xlu0 64
      %798 = vperm.xlu0 %797, %v724
      %v799 = vpop.permute.xlu0 %798
      %802 = vset.pattern.permute.xlu0 64
      %803 = vperm.xlu0 %802, %v725
      %v804 = vpop.permute.xlu0 %803
      %v806 = vrcp.pop %v729
      %v807 = vmul.f32 %v694, %v806
      %v808 = vrcp.pop %v734
      %v809 = vmul.f32 %v695, %v808
      %v810 = vrcp.pop %v739
      %v811 = vmul.f32 %v696, %v810
      %v812 = vrcp.pop %v744
      %v813 = vmul.f32 %v697, %v812
      %v814 = vrcp.pop %v749
      %v815 = vmul.f32 %v698, %v814
      %v816 = vrcp.pop %v754
      %v817 = vmul.f32 %v699, %v816
      %v818 = vrcp.pop %v759
      %v819 = vmul.f32 %v700, %v818
      %v820 = vrcp.pop %v764
      %v821 = vmul.f32 %v701, %v820
      %v822 = vrcp.pop %v769
      %v823 = vmul.f32 %v702, %v822
      %v824 = vrcp.pop %v774
      %v825 = vmul.f32 %v703, %v824
      %v826 = vrcp.pop %v779
      %v827 = vmul.f32 %v704, %v826
      %v828 = vrcp.pop %v784
      %v829 = vmul.f32 %v705, %v828
      %v830 = vrcp.pop %v789
      %v831 = vmul.f32 %v706, %v830
      %v832 = vrcp.pop %v794
      %v833 = vmul.f32 %v707, %v832
      %v834 = vrcp.pop %v799
      %v835 = vmul.f32 %v708, %v834
      %v836 = vrcp.pop %v804
      %v837 = vmul.f32 %v709, %v836
      %vm838 = vcmp.lt.s32.totalorder %v469, 16
      %vm839 = vcmp.lt.s32.totalorder %v470, 16
      %vm840 = vcmp.lt.s32.totalorder %v471, 16
      %vm841 = vcmp.lt.s32.totalorder %v472, 16
      %vm842 = vcmp.lt.s32.totalorder %v473, 16
      %vm843 = vcmp.lt.s32.totalorder %v474, 16
      %vm844 = vcmp.lt.s32.totalorder %v475, 16
      %vm845 = vcmp.lt.s32.totalorder %v476, 16
      %vm846 = vcmp.lt.s32.totalorder %v477, 16
      %vm847 = vcmp.lt.s32.totalorder %v478, 16
      %vm848 = vcmp.lt.s32.totalorder %v479, 16
      %vm849 = vcmp.lt.s32.totalorder %v480, 16
      %vm850 = vcmp.lt.s32.totalorder %v481, 16
      %vm851 = vcmp.lt.s32.totalorder %v482, 16
      %vm852 = vcmp.lt.s32.totalorder %v483, 16
      %vm853 = vcmp.lt.s32.totalorder %v484, 16
      %v854 = vsel %vm838, 1, 0
      %v855 = vsel %vm839, 1, 0
      %v856 = vsel %vm840, 1, 0
      %v857 = vsel %vm841, 1, 0
      %v858 = vsel %vm842, 1, 0
      %v859 = vsel %vm843, 1, 0
      %v860 = vsel %vm844, 1, 0
      %v861 = vsel %vm845, 1, 0
      %v862 = vsel %vm846, 1, 0
      %v863 = vsel %vm847, 1, 0
      %v864 = vsel %vm848, 1, 0
      %v865 = vsel %vm849, 1, 0
      %v866 = vsel %vm850, 1, 0
      %v867 = vsel %vm851, 1, 0
      %v868 = vsel %vm852, 1, 0
      %v869 = vsel %vm853, 1, 0
      %v870 = vcvt.s32.f32 %v854
      %v871 = vcvt.s32.f32 %v855
      %v872 = vcvt.s32.f32 %v856
      %v873 = vcvt.s32.f32 %v857
      %v874 = vcvt.s32.f32 %v858
      %v875 = vcvt.s32.f32 %v859
      %v876 = vcvt.s32.f32 %v860
      %v877 = vcvt.s32.f32 %v861
      %v878 = vcvt.s32.f32 %v862
      %v879 = vcvt.s32.f32 %v863
      %v880 = vcvt.s32.f32 %v864
      %v881 = vcvt.s32.f32 %v865
      %v882 = vcvt.s32.f32 %v866
      %v883 = vcvt.s32.f32 %v867
      %v884 = vcvt.s32.f32 %v868
      %v885 = vcvt.s32.f32 %v869
      %v886 = vmul.f32 %v807, %v870
      %v887 = vmul.f32 %v809, %v871
      %v888 = vmul.f32 %v811, %v872
      %v889 = vmul.f32 %v813, %v873
      %v890 = vmul.f32 %v815, %v874
      %v891 = vmul.f32 %v817, %v875
      %v892 = vmul.f32 %v819, %v876
      %v893 = vmul.f32 %v821, %v877
      %v894 = vmul.f32 %v823, %v878
      %v895 = vmul.f32 %v825, %v879
      %v896 = vmul.f32 %v827, %v880
      %v897 = vmul.f32 %v829, %v881
      %v898 = vmul.f32 %v831, %v882
      %v899 = vmul.f32 %v833, %v883
      %v900 = vmul.f32 %v835, %v884
      %v901 = vmul.f32 %v837, %v885
      %v902 = vadd.f32 %v886, %v887
      %v903 = vadd.f32 %v902, %v888
      %v904 = vadd.f32 %v903, %v889
      %v905 = vadd.f32 %v904, %v890
      %v906 = vadd.f32 %v905, %v891
      %v907 = vadd.f32 %v906, %v892
      %v908 = vadd.f32 %v907, %v893
      %v909 = vadd.f32 %v908, %v894
      %v910 = vadd.f32 %v909, %v895
      %v911 = vadd.f32 %v910, %v896
      %v912 = vadd.f32 %v911, %v897
      %v913 = vadd.f32 %v912, %v898
      %v914 = vadd.f32 %v913, %v899
      %v915 = vadd.f32 %v914, %v900
      %v916 = vadd.f32 %v915, %v901
      %v917 = vrot.slane %v916, 4
      %v918 = vadd.f32 %v916, %v917
      %v919 = vrot.slane %v918, 2
      %v920 = vadd.f32 %v918, %v919
      %v921 = vrot.slane %v920, 1
      %v922 = vadd.f32 %v920, %v921
      %v923 = vmul.f32 %v922, 0.0625
      %v924 = vsub.f32 %v886, %v923
      %v925 = vsub.f32 %v887, %v923
      %v926 = vsub.f32 %v888, %v923
      %v927 = vsub.f32 %v889, %v923
      %v928 = vsub.f32 %v890, %v923
      %v929 = vsub.f32 %v891, %v923
      %v930 = vsub.f32 %v892, %v923
      %v931 = vsub.f32 %v893, %v923
      %v932 = vsub.f32 %v894, %v923
      %v933 = vsub.f32 %v895, %v923
      %v934 = vsub.f32 %v896, %v923
      %v935 = vsub.f32 %v897, %v923
      %v936 = vsub.f32 %v898, %v923
      %v937 = vsub.f32 %v899, %v923
      %v938 = vsub.f32 %v900, %v923
      %v939 = vsub.f32 %v901, %v923
      %v940 = vmul.f32 %v924, %v870
      %v941 = vmul.f32 %v925, %v871
      %v942 = vmul.f32 %v926, %v872
      %v943 = vmul.f32 %v927, %v873
      %v944 = vmul.f32 %v928, %v874
      %v945 = vmul.f32 %v929, %v875
      %v946 = vmul.f32 %v930, %v876
      %v947 = vmul.f32 %v931, %v877
      %v948 = vmul.f32 %v932, %v878
      %v949 = vmul.f32 %v933, %v879
      %v950 = vmul.f32 %v934, %v880
      %v951 = vmul.f32 %v935, %v881
      %v952 = vmul.f32 %v936, %v882
      %v953 = vmul.f32 %v937, %v883
      %v954 = vmul.f32 %v938, %v884
      %v955 = vmul.f32 %v939, %v885
      %v956 = vmul.f32 %v940, %v940
      %v957 = vmul.f32 %v941, %v941
      %v958 = vmul.f32 %v942, %v942
      %v959 = vmul.f32 %v943, %v943
      %v960 = vmul.f32 %v944, %v944
      %v961 = vmul.f32 %v945, %v945
      %v962 = vmul.f32 %v946, %v946
      %v963 = vmul.f32 %v947, %v947
      %v964 = vmul.f32 %v948, %v948
      %v965 = vmul.f32 %v949, %v949
      %v966 = vmul.f32 %v950, %v950
      %v967 = vmul.f32 %v951, %v951
      %v968 = vmul.f32 %v952, %v952
      %v969 = vmul.f32 %v953, %v953
      %v970 = vmul.f32 %v954, %v954
      %v971 = vmul.f32 %v955, %v955
      %v972 = vadd.f32 %v956, %v957
      %v973 = vadd.f32 %v972, %v958
      %v974 = vadd.f32 %v973, %v959
      %v975 = vadd.f32 %v974, %v960
      %v976 = vadd.f32 %v975, %v961
      %v977 = vadd.f32 %v976, %v962
      %v978 = vadd.f32 %v977, %v963
      %v979 = vadd.f32 %v978, %v964
      %v980 = vadd.f32 %v979, %v965
      %v981 = vadd.f32 %v980, %v966
      %v982 = vadd.f32 %v981, %v967
      %v983 = vadd.f32 %v982, %v968
      %v984 = vadd.f32 %v983, %v969
      %v985 = vadd.f32 %v984, %v970
      %v986 = vadd.f32 %v985, %v971
      %v987 = vrot.slane %v986, 4
      %v988 = vadd.f32 %v986, %v987
      %v989 = vrot.slane %v988, 2
      %v990 = vadd.f32 %v988, %v989
      %v991 = vrot.slane %v990, 1
      %v992 = vadd.f32 %v990, %v991
      %v993 = vmul.f32 %v992, 0.0625
      %v994 = vadd.f32 %v993, 1e-05
      %v995 = vrsqrt.pop %v994
      %v996 = vmul.f32 %v924, %v995
      %v997 = vmul.f32 %v925, %v995
      %v998 = vmul.f32 %v926, %v995
      %v999 = vmul.f32 %v927, %v995
      %v1000 = vmul.f32 %v928, %v995
      %v1001 = vmul.f32 %v929, %v995
      %v1002 = vmul.f32 %v930, %v995
      %v1003 = vmul.f32 %v931, %v995
      %v1004 = vmul.f32 %v932, %v995
      %v1005 = vmul.f32 %v933, %v995
      %v1006 = vmul.f32 %v934, %v995
      %v1007 = vmul.f32 %v935, %v995
      %v1008 = vmul.f32 %v936, %v995
      %v1009 = vmul.f32 %v937, %v995
      %v1010 = vmul.f32 %v938, %v995
      %v1011 = vmul.f32 %v939, %v995
      %v1012 = vld [vmem:[#allocation11] sm:$0x1]
      %v1014 = vlaneseq
      %v1015 = vshrl.u32 %v1014, 7
      %v1016 = vsub.s32 0, %v1015
      %v1017 = vrot.slane %v1012, %v1016
      %v1019 = vmul.f32 %v996, %v1017
      %v1020 = vmul.f32 %v997, %v1017
      %v1021 = vmul.f32 %v998, %v1017
      %v1022 = vmul.f32 %v999, %v1017
      %v1023 = vmul.f32 %v1000, %v1017
      %v1024 = vmul.f32 %v1001, %v1017
      %v1025 = vmul.f32 %v1002, %v1017
      %v1026 = vmul.f32 %v1003, %v1017
      %v1027 = vmul.f32 %v1004, %v1017
      %v1028 = vmul.f32 %v1005, %v1017
      %v1029 = vmul.f32 %v1006, %v1017
      %v1030 = vmul.f32 %v1007, %v1017
      %v1031 = vmul.f32 %v1008, %v1017
      %v1032 = vmul.f32 %v1009, %v1017
      %v1033 = vmul.f32 %v1010, %v1017
      %v1034 = vmul.f32 %v1011, %v1017
      %v1035 = vld [vmem:[#allocation12] sm:$0x1]
      %v1037 = vlaneseq
      %v1038 = vshrl.u32 %v1037, 7
      %v1039 = vsub.s32 0, %v1038
      %v1040 = vrot.slane %v1035, %v1039
      %v1042 = vadd.f32 %v1019, %v1040
      %v1043 = vadd.f32 %v1020, %v1040
      %v1044 = vadd.f32 %v1021, %v1040
      %v1045 = vadd.f32 %v1022, %v1040
      %v1046 = vadd.f32 %v1023, %v1040
      %v1047 = vadd.f32 %v1024, %v1040
      %v1048 = vadd.f32 %v1025, %v1040
      %v1049 = vadd.f32 %v1026, %v1040
      %v1050 = vadd.f32 %v1027, %v1040
      %v1051 = vadd.f32 %v1028, %v1040
      %v1052 = vadd.f32 %v1029, %v1040
      %v1053 = vadd.f32 %v1030, %v1040
      %v1054 = vadd.f32 %v1031, %v1040
      %v1055 = vadd.f32 %v1032, %v1040
      %v1056 = vadd.f32 %v1033, %v1040
      %v1057 = vadd.f32 %v1034, %v1040
      %v1058 = vld [vmem:[#allocation14] sm:$0xff]
      %v1059 = vld [vmem:[#allocation14 + $0x8] sm:$0xff]
      %v1060 = vld [vmem:[#allocation14 + $0x10] sm:$0xff]
      %v1061 = vld [vmem:[#allocation14 + $0x18] sm:$0xff]
      %v1062 = vld [vmem:[#allocation14 + $0x20] sm:$0xff]
      %v1063 = vld [vmem:[#allocation14 + $0x28] sm:$0xff]
      %v1064 = vld [vmem:[#allocation14 + $0x30] sm:$0xff]
      %v1065 = vld [vmem:[#allocation14 + $0x38] sm:$0xff]
      %v1066 = vld [vmem:[#allocation14 + $0x40] sm:$0xff]
      %v1067 = vld [vmem:[#allocation14 + $0x48] sm:$0xff]
      %v1068 = vld [vmem:[#allocation14 + $0x50] sm:$0xff]
      %v1069 = vld [vmem:[#allocation14 + $0x58] sm:$0xff]
      %v1070 = vld [vmem:[#allocation14 + $0x60] sm:$0xff]
      %v1071 = vld [vmem:[#allocation14 + $0x68] sm:$0xff]
      %v1072 = vld [vmem:[#allocation14 + $0x70] sm:$0xff]
      %v1073 = vld [vmem:[#allocation14 + $0x78] sm:$0xff]
      %v1074 = vld [vmem:[#allocation15] sm:$0x1]
      %v1076 = vlaneseq
      %v1077 = vshrl.u32 %v1076, 7
      %v1078 = vsub.s32 0, %v1077
      %v1079 = vrot.slane %v1074, %v1078
      %1081 = vmatprep.subr.mxu0 0.0
      %1082 = vmatpush1.msra.mxu0 %v1058
      %1083 = vmatprep.subr.mxu0 0.0
      %1084 = vmatpush1.msra.mxu0 %v1059
      %1085 = vmatprep.subr.mxu0 0.0
      %1086 = vmatpush1.msra.mxu0 %v1060
      %1087 = vmatprep.subr.mxu0 0.0
      %1088 = vmatpush1.msra.mxu0 %v1061
      %1089 = vmatprep.subr.mxu0 0.0
      %1090 = vmatpush1.msra.mxu0 %v1062
      %1091 = vmatprep.subr.mxu0 0.0
      %1092 = vmatpush1.msra.mxu0 %v1063
      %1093 = vmatprep.subr.mxu0 0.0
      %1094 = vmatpush1.msra.mxu0 %v1064
      %1095 = vmatprep.subr.mxu0 0.0
      %1096 = vmatpush1.msra.mxu0 %v1065
      %1097 = vmatprep.subr.mxu0 0.0
      %1098 = vmatpush1.msra.mxu0 %v1066
      %1099 = vmatprep.subr.mxu0 0.0
      %1100 = vmatpush1.msra.mxu0 %v1067
      %1101 = vmatprep.subr.mxu0 0.0
      %1102 = vmatpush1.msra.mxu0 %v1068
      %1103 = vmatprep.subr.mxu0 0.0
      %1104 = vmatpush1.msra.mxu0 %v1069
      %1105 = vmatprep.subr.mxu0 0.0
      %1106 = vmatpush1.msra.mxu0 %v1070
      %1107 = vmatprep.subr.mxu0 0.0
      %1108 = vmatpush1.msra.mxu0 %v1071
      %1109 = vmatprep.subr.mxu0 0.0
      %1110 = vmatpush1.msra.mxu0 %v1072
      %1111 = vmatprep.subr.mxu0 0.0
      %1112 = vmatpush1.msra.mxu0 %v1073
      %1113 = vmatprep.subr.mxu0 0.0
      %1114 = vmatpush1.msra.mxu0 0.0
      %1115 = vmatprep.subr.mxu0 0.0
      %1116 = vmatpush1.msra.mxu0 0.0
      %1117 = vmatprep.subr.mxu0 0.0
      %1118 = vmatpush1.msra.mxu0 0.0
      %1119 = vmatprep.subr.mxu0 0.0
      %1120 = vmatpush1.msra.mxu0 0.0
      %1121 = vmatprep.subr.mxu0 0.0
      %1122 = vmatpush1.msra.mxu0 0.0
      %1123 = vmatprep.subr.mxu0 0.0
      %1124 = vmatpush1.msra.mxu0 0.0
      %1125 = vmatprep.subr.mxu0 0.0
      %1126 = vmatpush1.msra.mxu0 0.0
      %1127 = vmatprep.subr.mxu0 0.0
      %1128 = vmatpush1.msra.mxu0 0.0
      %1129 = vmatprep.subr.mxu0 0.0
      %1130 = vmatpush1.msra.mxu0 0.0
      %1131 = vmatprep.subr.mxu0 0.0
      %1132 = vmatpush1.msra.mxu0 0.0
      %1133 = vmatprep.subr.mxu0 0.0
      %1134 = vmatpush1.msra.mxu0 0.0
      %1135 = vmatprep.subr.mxu0 0.0
      %1136 = vmatpush1.msra.mxu0 0.0
      %1137 = vmatprep.subr.mxu0 0.0
      %1138 = vmatpush1.msra.mxu0 0.0
      %1139 = vmatprep.subr.mxu0 0.0
      %1140 = vmatpush1.msra.mxu0 0.0
      %1141 = vmatprep.subr.mxu0 0.0
      %1142 = vmatpush1.msra.mxu0 0.0
      %1143 = vmatprep.subr.mxu0 0.0
      %1144 = vmatpush1.msra.mxu0 0.0
      %1145 = vmatprep.mubr.f32.mxu0 0.0
      %1146 = vmatmul.mubr.f32.gmra.mrb[0].mxu0 %v1042
      %v1147 = vpop.f32.mrb[0].mxu0
      %v1148 = vadd.f32 %v1079, %v1147
      %v1149 = vpop.f32.mrb[0].mxu0
      %1150 = vmatprep.mubr.f32.mxu0 0.0
      %1151 = vmatmul.mubr.f32.gmra.mrb[0].mxu0 %v1043
      %v1152 = vpop.f32.mrb[0].mxu0
      %v1153 = vadd.f32 %v1079, %v1152
      %v1154 = vpop.f32.mrb[0].mxu0
      %1155 = vmatprep.mubr.f32.mxu0 0.0
      %1156 = vmatmul.mubr.f32.gmra.mrb[0].mxu0 %v1044
      %v1157 = vpop.f32.mrb[0].mxu0
      %v1158 = vpop.f32.mrb[0].mxu0
      %1159 = vmatprep.mubr.f32.mxu0 0.0
      %1160 = vmatmul.mubr.f32.gmra.mrb[0].mxu0 %v1045
      %v1161 = vpop.f32.mrb[0].mxu0
      %v1162 = vpop.f32.mrb[0].mxu0
      %1163 = vmatprep.mubr.f32.mxu0 0.0
      %1164 = vmatmul.mubr.f32.gmra.mrb[0].mxu0 %v1046
      %v1165 = vpop.f32.mrb[0].mxu0
      %v1166 = vpop.f32.mrb[0].mxu0
      %1167 = vmatprep.mubr.f32.mxu0 0.0
      %1168 = vmatmul.mubr.f32.gmra.mrb[0].mxu0 %v1047
      %v1169 = vpop.f32.mrb[0].mxu0
      %v1170 = vpop.f32.mrb[0].mxu0
      %1171 = vmatprep.mubr.f32.mxu0 0.0
      %1172 = vmatmul.mubr.f32.gmra.mrb[0].mxu0 %v1048
      %v1173 = vpop.f32.mrb[0].mxu0
      %v1174 = vpop.f32.mrb[0].mxu0
      %1175 = vmatprep.mubr.f32.mxu0 0.0
      %1176 = vmatmul.mubr.f32.gmra.mrb[0].mxu0 %v1049
      %v1177 = vpop.f32.mrb[0].mxu0
      %v1178 = vpop.f32.mrb[0].mxu0
      %1179 = vmatprep.mubr.f32.mxu0 0.0
      %1180 = vmatmul.mubr.f32.gmra.mrb[0].mxu0 %v1050
      %v1181 = vpop.f32.mrb[0].mxu0
      %v1182 = vpop.f32.mrb[0].mxu0
      %1183 = vmatprep.mubr.f32.mxu0 0.0
      %1184 = vmatmul.mubr.f32.gmra.mrb[0].mxu0 %v1051
      %v1185 = vpop.f32.mrb[0].mxu0
      %v1186 = vpop.f32.mrb[0].mxu0
      %1187 = vmatprep.mubr.f32.mxu0 0.0
      %1188 = vmatmul.mubr.f32.gmra.mrb[0].mxu0 %v1052
      %v1189 = vpop.f32.mrb[0].mxu0
      %v1190 = vpop.f32.mrb[0].mxu0
      %1191 = vmatprep.mubr.f32.mxu0 0.0
      %1192 = vmatmul.mubr.f32.gmra.mrb[0].mxu0 %v1053
      %v1193 = vpop.f32.mrb[0].mxu0
      %v1194 = vpop.f32.mrb[0].mxu0
      %1195 = vmatprep.mubr.f32.mxu0 0.0
      %1196 = vmatmul.mubr.f32.gmra.mrb[0].mxu0 %v1054
      %v1197 = vpop.f32.mrb[0].mxu0
      %v1198 = vpop.f32.mrb[0].mxu0
      %1199 = vmatprep.mubr.f32.mxu0 0.0
      %1200 = vmatmul.mubr.f32.gmra.mrb[0].mxu0 %v1055
      %v1201 = vpop.f32.mrb[0].mxu0
      %v1202 = vpop.f32.mrb[0].mxu0
      %1203 = vmatprep.mubr.f32.mxu0 0.0
      %1204 = vmatmul.mubr.f32.gmra.mrb[0].mxu0 %v1056
      %v1205 = vpop.f32.mrb[0].mxu0
      %v1206 = vpop.f32.mrb[0].mxu0
      %1207 = vmatprep.mubr.f32.mxu0 0.0
      %1208 = vmatmul.mubr.f32.gmra.mrb[0].mxu0 %v1057
      %v1209 = vpop.f32.mrb[0].mxu0
      %v1210 = vpop.f32.mrb[0].mxu0
      %1211 = vdwg.mxu0
      %v1212 = vmax.f32 %v1148, 0.0
      %v1213 = vmax.f32 %v1153, 0.0
      %vm1214 = vcmask 523264
      %1215 = vst.msk [vmem:[#allocation17] sm:$0xff] %vm1214, %v1212
      %1216 = vst.msk [vmem:[#allocation17 + $0x8] sm:$0xff] %vm1214, %v1213
    $region61: #{conv_forward.1} parent=1 // pred_fallthru
      _
    // Predicated region
    $region62: #{conv_forward.1} parent=1 // pred_check
      _
    $region63: #{conv_forward.1} parent=1 // pred_check_branch
      %1218 = sbr.rel (0) target = $region65
    $region64: #{conv_forward.1} parent=1 // pred_region
      %s1220 = ssub.s32 256, 256
      %1221 = vsyncadd [#allocation8], %s1220
      %s1222 = sshll.u32 [#allocation17], 4
      %s1223 = int_to_ptr.vmem [resolvable:$true] %s1222
      %1228 = dma.vmem_to_hbm [thread:$0]  %s1223, 256, %s7, [#allocation8], 128, 128, 8
    $region65: #{conv_forward.1} parent=1 // pred_fallthru
      _
    // Predicated region
    $region66: #{conv_forward.1} parent=1 // pred_check
      _
    $region67: #{conv_forward.1} parent=1 // pred_check_branch
      %1230 = sbr.rel (0) target = $region69
    $region68: #{conv_forward.1} parent=1 // pred_region
      %1231 = dma.done [#allocation8], 256
    $region69: #{conv_forward.1} parent=1 // pred_fallthru
      _
    %1232 = vsyncpa [#allocation7], 1
    %1233 = vsyncpa [#allocation10], 1
    %1234 = vsyncpa [#allocation13], 1
    %1235 = vsyncpa [#allocation16], 1
    %1236 = vsyncpa [#allocation8], 1
  %1237 = vsyncmov [#allocation5]
  %s1238 = vpop.sfrf %1237
  %p1239 = scmp.eq.s32.totalorder %s1238, 0
  %p1240 = pneg %p1239
  %1242 = shalt.err (%p1240)

</llo_original>
